<compile_context>
chip_gen: v7x
topology: tpu7x:2x2x1
jax: 0.10.0
libtpu: 0.0.40
codegen_flags: <defaults>
</compile_context>

<pallas_src>
import functools

import jax
import jax.numpy as jnp
from jax.experimental import pallas as pl
from jax.experimental.pallas import tpu as pltpu


def _elu(z):
    # ELU(alpha=1): x if x > 0 else exp(x) - 1   (clamp arg of exp to avoid inf)
    return jnp.where(z > 0, z, jnp.exp(jnp.minimum(z, 0.0)) - 1.0)


# ----------------------------- Pallas kernel --------------------------------

def _make_tcn_kernel(C, L, N, K, dilations):
    """Fused TCN forward for the whole batch, folded to a (C, N*L) tile."""
    NL = N * L

    def kernel(x_ref, w_big_ref, b_big_ref, w_c_ref, b_c_ref,
               out_ref, skip_ref):
        # time position within each batch segment, per lane (hoisted, reused
        # by every tap mask of every layer)
        ti = jax.lax.broadcasted_iota(jnp.int32, (C, NL), 1)
        if (L & (L - 1)) == 0:
            pos = jnp.bitwise_and(ti, L - 1)
        else:
            pos = jnp.remainder(ti, L)

        def shifted(x, s):
            # y[:, j] = x[:, j + s] when the tap stays inside its batch
            # segment, else 0 (== the conv's zero padding).  The circular roll
            # may cross a batch boundary only where the mask zeroes it anyway.
            if s == 0:
                return x
            y = pltpu.roll(x, (-s) % NL, axis=1)
            valid = jnp.logical_and(pos + s >= 0, pos + s < L)
            return jnp.where(valid, y, 0.0)

        x = x_ref[...]                                    # (C, N*L) f32
        skip_acc = jnp.zeros((C, NL), jnp.float32)

        for l, d in enumerate(dilations):
            # tap time-offsets: [res (0)] + conv_a (dil d) + conv_b (dil 2d)
            shifts = ([0]
                      + [(t - K // 2) * d for t in range(K)]
                      + [(t - K // 2) * 2 * d for t in range(K)])
            # stacked contraction input: ((2K+1)*C, N*L)
            x_stack = jnp.concatenate([shifted(x, s) for s in shifts], axis=0)

            # one MXU pass for res_conv + conv_a + conv_b, bias added once
            y = jnp.dot(w_big_ref[l], x_stack,
                        preferred_element_type=jnp.float32) + b_big_ref[l]
            res = y[0:C, :]                               # (C, N*L)
            h = _elu(y[C:3 * C, :])                       # ELU(concat[a, b])
            # dropout is identity in eval mode

            # conv_c: single (C, 2C) @ (2C, N*L) matmul
            skip = jnp.dot(w_c_ref[l], h,
                           preferred_element_type=jnp.float32) + b_c_ref[l]

            x = res + skip
            skip_acc = skip_acc + skip

        out_ref[...] = _elu(x)                            # final activation fused
        skip_ref[...] = skip_acc

    return kernel


# ----------------------------- wrapper ---------------------------------------

def tcn_forward_pallas(x, all_params, kernel_size, dilations):
    """x: (N, C, L) float32 -> (ELU(x_last), sum of skips), both (N, C, L)."""
    N, C, L = x.shape
    K = kernel_size
    NL = N * L

    # ---- pack weights/biases (tiny, one-time layout plumbing in XLA) -------
    w_big_l, b_big_l, w_c_l, b_c_l = [], [], [], []
    for (w_res, b_res, w_a, b_a, w_b, b_b, w_c, b_c) in all_params:
        wb = jnp.zeros((3 * C, (2 * K + 1) * C), jnp.float32)
        wb = wb.at[0:C, 0:C].set(w_res[:, :, 0])                       # res
        for t in range(K):
            wb = wb.at[C:2 * C, (1 + t) * C:(2 + t) * C].set(w_a[:, :, t])
            wb = wb.at[2 * C:3 * C,
                       (1 + K + t) * C:(2 + K + t) * C].set(w_b[:, :, t])
        w_big_l.append(wb)
        b_big_l.append(jnp.concatenate([b_res, b_a, b_b]).reshape(3 * C, 1))
        w_c_l.append(w_c[:, :, 0])
        b_c_l.append(b_c.reshape(C, 1))

    w_big = jnp.stack(w_big_l)          # (nlayers, 3C, (2K+1)*C)
    b_big = jnp.stack(b_big_l)          # (nlayers, 3C, 1)
    w_cc = jnp.stack(w_c_l)             # (nlayers, C, 2C)
    b_cc = jnp.stack(b_c_l)             # (nlayers, C, 1)

    # ---- lane-dense layout: (N, C, L) -> (C, N*L) ---------------------------
    x2d = jnp.transpose(x, (1, 0, 2)).reshape(C, NL)

    kern = _make_tcn_kernel(C=C, L=L, N=N, K=K, dilations=tuple(dilations))

    # Single grid-less pallas_call: whole arrays (a few KiB) live in VMEM.
    out2d, skip2d = pl.pallas_call(
        kern,
        out_shape=(jax.ShapeDtypeStruct((C, NL), jnp.float32),
                   jax.ShapeDtypeStruct((C, NL), jnp.float32)),
    )(x2d, w_big, b_big, w_cc, b_cc)

    out = jnp.transpose(out2d.reshape(C, N, L), (1, 0, 2))
    skipped = jnp.transpose(skip2d.reshape(C, N, L), (1, 0, 2))
    return out, skipped


# ----------------------------- reference (pure JAX) --------------------------

def _conv1d_ref(x, w, b, padding, dilation):
    y = jax.lax.conv_general_dilated(
        x, w, window_strides=(1,), padding=[(padding, padding)],
        rhs_dilation=(dilation,), dimension_numbers=('NCH', 'OIH', 'NCH'),
        precision=jax.lax.Precision.HIGHEST)
    return y + b[None, :, None]


def _block_ref(x, params, K, d):
    w_res, b_res, w_a, b_a, w_b, b_b, w_c, b_c = params
    pad = (K // 2) * d
    res = _conv1d_ref(x, w_res, b_res, 0, 1)
    xa = _conv1d_ref(x, w_a, b_a, pad, d)
    xb = _conv1d_ref(x, w_b, b_b, 2 * pad, 2 * d)
    h = _elu(jnp.concatenate([xa, xb], axis=1))
    skip = _conv1d_ref(h, w_c, b_c, 0, 1)
    return res + skip, skip


def _tcn_ref(x, all_params, K, dilations):
    skipped = jnp.zeros_like(x)
    for p, d in zip(all_params, dilations):
        x, s = _block_ref(x, p, K, d)
        skipped = skipped + s
    return _elu(x), skipped


# ----------------------------- params ----------------------------------------

def init_tcn_params(key, C, K, n_blocks):
    """Deterministic Conv1d-style (uniform +-1/sqrt(fan_in*k)) init."""
    params = []
    for _ in range(n_blocks):
        key, *ks = jax.random.split(key, 9)

        def u(k, shape, fan):
            bound = 1.0 / (fan ** 0.5)
            return jax.random.uniform(k, shape, jnp.float32, -bound, bound)

        w_res = u(ks[0], (C, C, 1), C * 1)
        b_res = u(ks[1], (C,), C * 1)
        w_a = u(ks[2], (C, C, K), C * K)
        b_a = u(ks[3], (C,), C * K)
        w_b = u(ks[4], (C, C, K), C * K)
        b_b = u(ks[5], (C,), C * K)
        w_c = u(ks[6], (C, 2 * C, 1), 2 * C)
        b_c = u(ks[7], (C,), 2 * C)
        params.append((w_res, b_res, w_a, b_a, w_b, b_b, w_c, b_c))
    return params


# ----------------------------- main -------------------------------------------

if __name__ == "__main__":
    # small shapes consistent with the module: batch=2, channels=8, length=64
    # (N * L = 128 -> one full lane-dense tile)
    N, C, L = 2, 8, 64
    kernel_size = 5
    dilations = [1, 2, 4]

    key = jax.random.PRNGKey(0)
    kx, kp = jax.random.split(key)
    x = jax.random.normal(kx, (N, C, L), jnp.float32)
    params = init_tcn_params(kp, C, kernel_size, len(dilations))

    run = jax.jit(functools.partial(
        tcn_forward_pallas, kernel_size=kernel_size, dilations=dilations))
    out, skipped = run(x, params)
    out = jax.block_until_ready(out)
    skipped = jax.block_until_ready(skipped)

    ref_out, ref_skipped = _tcn_ref(x, params, kernel_size, dilations)

    assert out.shape == (N, C, L) and skipped.shape == (N, C, L)
    assert jnp.allclose(out, ref_out, atol=1e-4, rtol=1e-4), "activation mismatch"
    assert jnp.allclose(skipped, ref_skipped, atol=1e-4, rtol=1e-4), "skip mismatch"

    print("KERNEL_OK")
</pallas_src>

<mosaic_0001>
module attributes {stable_mosaic.version = 11 : i64} {
  func.func @kernel(%arg0: memref<8x128xf32, #tpu.memory_space<vmem>>, %arg1: memref<3x24x88xf32, #tpu.memory_space<vmem>>, %arg2: memref<3x24x1xf32, #tpu.memory_space<vmem>>, %arg3: memref<3x8x16xf32, #tpu.memory_space<vmem>>, %arg4: memref<3x8x1xf32, #tpu.memory_space<vmem>>, %arg5: memref<8x128xf32, #tpu.memory_space<vmem>>, %arg6: memref<8x128xf32, #tpu.memory_space<vmem>>) attributes {dimension_semantics = [], scalar_prefetch = 0 : i64, scratch_operands = 0 : i64, tpu.core_type = #tpu.core_type<tc>} {
    %0 = tpu.iota {dimensions = array<i32: 1>} : vector<8x128xi32>
    %c63_i32 = arith.constant 63 : i32
    %1 = vector.broadcast %c63_i32 : i32 to vector<8x128xi32>
    %2 = arith.andi %0, %1 : vector<8x128xi32>
    %c0 = arith.constant 0 : index
    %c0_0 = arith.constant 0 : index
    %3 = vector.load %arg0[%c0, %c0_0] : memref<8x128xf32, #tpu.memory_space<vmem>>, vector<8x128xf32>
    %cst = arith.constant 0.000000e+00 : f32
    %4 = vector.broadcast %cst : f32 to vector<8x128xf32>
    %c2_i32 = arith.constant 2 : i32
    %5 = tpu.dynamic_rotate %3 by %c2_i32 dim 1 : vector<8x128xf32>, i32 -> vector<8x128xf32>
    %c-2_i32 = arith.constant -2 : i32
    %6 = vector.broadcast %c-2_i32 : i32 to vector<8x128xi32>
    %7 = arith.addi %2, %6 : vector<8x128xi32>
    %c0_i32 = arith.constant 0 : i32
    %8 = vector.broadcast %c0_i32 : i32 to vector<8x128xi32>
    %9 = arith.cmpi sge, %7, %8 : vector<8x128xi32>
    %c-2_i32_1 = arith.constant -2 : i32
    %10 = vector.broadcast %c-2_i32_1 : i32 to vector<8x128xi32>
    %11 = arith.addi %2, %10 : vector<8x128xi32>
    %c64_i32 = arith.constant 64 : i32
    %12 = vector.broadcast %c64_i32 : i32 to vector<8x128xi32>
    %13 = arith.cmpi slt, %11, %12 : vector<8x128xi32>
    %14 = arith.andi %9, %13 : vector<8x128xi1>
    %cst_2 = arith.constant 0.000000e+00 : f32
    %15 = vector.broadcast %cst_2 : f32 to vector<8x128xf32>
    %16 = arith.select %14, %5, %15 : vector<8x128xi1>, vector<8x128xf32>
    %c1_i32 = arith.constant 1 : i32
    %17 = tpu.dynamic_rotate %3 by %c1_i32 dim 1 : vector<8x128xf32>, i32 -> vector<8x128xf32>
    %c-1_i32 = arith.constant -1 : i32
    %18 = vector.broadcast %c-1_i32 : i32 to vector<8x128xi32>
    %19 = arith.addi %2, %18 : vector<8x128xi32>
    %c0_i32_3 = arith.constant 0 : i32
    %20 = vector.broadcast %c0_i32_3 : i32 to vector<8x128xi32>
    %21 = arith.cmpi sge, %19, %20 : vector<8x128xi32>
    %c-1_i32_4 = arith.constant -1 : i32
    %22 = vector.broadcast %c-1_i32_4 : i32 to vector<8x128xi32>
    %23 = arith.addi %2, %22 : vector<8x128xi32>
    %c64_i32_5 = arith.constant 64 : i32
    %24 = vector.broadcast %c64_i32_5 : i32 to vector<8x128xi32>
    %25 = arith.cmpi slt, %23, %24 : vector<8x128xi32>
    %26 = arith.andi %21, %25 : vector<8x128xi1>
    %cst_6 = arith.constant 0.000000e+00 : f32
    %27 = vector.broadcast %cst_6 : f32 to vector<8x128xf32>
    %28 = arith.select %26, %17, %27 : vector<8x128xi1>, vector<8x128xf32>
    %c127_i32 = arith.constant 127 : i32
    %29 = tpu.dynamic_rotate %3 by %c127_i32 dim 1 : vector<8x128xf32>, i32 -> vector<8x128xf32>
    %c1_i32_7 = arith.constant 1 : i32
    %30 = vector.broadcast %c1_i32_7 : i32 to vector<8x128xi32>
    %31 = arith.addi %2, %30 : vector<8x128xi32>
    %c0_i32_8 = arith.constant 0 : i32
    %32 = vector.broadcast %c0_i32_8 : i32 to vector<8x128xi32>
    %33 = arith.cmpi sge, %31, %32 : vector<8x128xi32>
    %c1_i32_9 = arith.constant 1 : i32
    %34 = vector.broadcast %c1_i32_9 : i32 to vector<8x128xi32>
    %35 = arith.addi %2, %34 : vector<8x128xi32>
    %c64_i32_10 = arith.constant 64 : i32
    %36 = vector.broadcast %c64_i32_10 : i32 to vector<8x128xi32>
    %37 = arith.cmpi slt, %35, %36 : vector<8x128xi32>
    %38 = arith.andi %33, %37 : vector<8x128xi1>
    %cst_11 = arith.constant 0.000000e+00 : f32
    %39 = vector.broadcast %cst_11 : f32 to vector<8x128xf32>
    %40 = arith.select %38, %29, %39 : vector<8x128xi1>, vector<8x128xf32>
    %c126_i32 = arith.constant 126 : i32
    %41 = tpu.dynamic_rotate %3 by %c126_i32 dim 1 : vector<8x128xf32>, i32 -> vector<8x128xf32>
    %c2_i32_12 = arith.constant 2 : i32
    %42 = vector.broadcast %c2_i32_12 : i32 to vector<8x128xi32>
    %43 = arith.addi %2, %42 : vector<8x128xi32>
    %c0_i32_13 = arith.constant 0 : i32
    %44 = vector.broadcast %c0_i32_13 : i32 to vector<8x128xi32>
    %45 = arith.cmpi sge, %43, %44 : vector<8x128xi32>
    %c2_i32_14 = arith.constant 2 : i32
    %46 = vector.broadcast %c2_i32_14 : i32 to vector<8x128xi32>
    %47 = arith.addi %2, %46 : vector<8x128xi32>
    %c64_i32_15 = arith.constant 64 : i32
    %48 = vector.broadcast %c64_i32_15 : i32 to vector<8x128xi32>
    %49 = arith.cmpi slt, %47, %48 : vector<8x128xi32>
    %50 = arith.andi %45, %49 : vector<8x128xi1>
    %cst_16 = arith.constant 0.000000e+00 : f32
    %51 = vector.broadcast %cst_16 : f32 to vector<8x128xf32>
    %52 = arith.select %50, %41, %51 : vector<8x128xi1>, vector<8x128xf32>
    %c4_i32 = arith.constant 4 : i32
    %53 = tpu.dynamic_rotate %3 by %c4_i32 dim 1 : vector<8x128xf32>, i32 -> vector<8x128xf32>
    %c-4_i32 = arith.constant -4 : i32
    %54 = vector.broadcast %c-4_i32 : i32 to vector<8x128xi32>
    %55 = arith.addi %2, %54 : vector<8x128xi32>
    %c0_i32_17 = arith.constant 0 : i32
    %56 = vector.broadcast %c0_i32_17 : i32 to vector<8x128xi32>
    %57 = arith.cmpi sge, %55, %56 : vector<8x128xi32>
    %c-4_i32_18 = arith.constant -4 : i32
    %58 = vector.broadcast %c-4_i32_18 : i32 to vector<8x128xi32>
    %59 = arith.addi %2, %58 : vector<8x128xi32>
    %c64_i32_19 = arith.constant 64 : i32
    %60 = vector.broadcast %c64_i32_19 : i32 to vector<8x128xi32>
    %61 = arith.cmpi slt, %59, %60 : vector<8x128xi32>
    %62 = arith.andi %57, %61 : vector<8x128xi1>
    %cst_20 = arith.constant 0.000000e+00 : f32
    %63 = vector.broadcast %cst_20 : f32 to vector<8x128xf32>
    %64 = arith.select %62, %53, %63 : vector<8x128xi1>, vector<8x128xf32>
    %c2_i32_21 = arith.constant 2 : i32
    %65 = tpu.dynamic_rotate %3 by %c2_i32_21 dim 1 : vector<8x128xf32>, i32 -> vector<8x128xf32>
    %c-2_i32_22 = arith.constant -2 : i32
    %66 = vector.broadcast %c-2_i32_22 : i32 to vector<8x128xi32>
    %67 = arith.addi %2, %66 : vector<8x128xi32>
    %c0_i32_23 = arith.constant 0 : i32
    %68 = vector.broadcast %c0_i32_23 : i32 to vector<8x128xi32>
    %69 = arith.cmpi sge, %67, %68 : vector<8x128xi32>
    %c-2_i32_24 = arith.constant -2 : i32
    %70 = vector.broadcast %c-2_i32_24 : i32 to vector<8x128xi32>
    %71 = arith.addi %2, %70 : vector<8x128xi32>
    %c64_i32_25 = arith.constant 64 : i32
    %72 = vector.broadcast %c64_i32_25 : i32 to vector<8x128xi32>
    %73 = arith.cmpi slt, %71, %72 : vector<8x128xi32>
    %74 = arith.andi %69, %73 : vector<8x128xi1>
    %cst_26 = arith.constant 0.000000e+00 : f32
    %75 = vector.broadcast %cst_26 : f32 to vector<8x128xf32>
    %76 = arith.select %74, %65, %75 : vector<8x128xi1>, vector<8x128xf32>
    %c126_i32_27 = arith.constant 126 : i32
    %77 = tpu.dynamic_rotate %3 by %c126_i32_27 dim 1 : vector<8x128xf32>, i32 -> vector<8x128xf32>
    %c2_i32_28 = arith.constant 2 : i32
    %78 = vector.broadcast %c2_i32_28 : i32 to vector<8x128xi32>
    %79 = arith.addi %2, %78 : vector<8x128xi32>
    %c0_i32_29 = arith.constant 0 : i32
    %80 = vector.broadcast %c0_i32_29 : i32 to vector<8x128xi32>
    %81 = arith.cmpi sge, %79, %80 : vector<8x128xi32>
    %c2_i32_30 = arith.constant 2 : i32
    %82 = vector.broadcast %c2_i32_30 : i32 to vector<8x128xi32>
    %83 = arith.addi %2, %82 : vector<8x128xi32>
    %c64_i32_31 = arith.constant 64 : i32
    %84 = vector.broadcast %c64_i32_31 : i32 to vector<8x128xi32>
    %85 = arith.cmpi slt, %83, %84 : vector<8x128xi32>
    %86 = arith.andi %81, %85 : vector<8x128xi1>
    %cst_32 = arith.constant 0.000000e+00 : f32
    %87 = vector.broadcast %cst_32 : f32 to vector<8x128xf32>
    %88 = arith.select %86, %77, %87 : vector<8x128xi1>, vector<8x128xf32>
    %c124_i32 = arith.constant 124 : i32
    %89 = tpu.dynamic_rotate %3 by %c124_i32 dim 1 : vector<8x128xf32>, i32 -> vector<8x128xf32>
    %c4_i32_33 = arith.constant 4 : i32
    %90 = vector.broadcast %c4_i32_33 : i32 to vector<8x128xi32>
    %91 = arith.addi %2, %90 : vector<8x128xi32>
    %c0_i32_34 = arith.constant 0 : i32
    %92 = vector.broadcast %c0_i32_34 : i32 to vector<8x128xi32>
    %93 = arith.cmpi sge, %91, %92 : vector<8x128xi32>
    %c4_i32_35 = arith.constant 4 : i32
    %94 = vector.broadcast %c4_i32_35 : i32 to vector<8x128xi32>
    %95 = arith.addi %2, %94 : vector<8x128xi32>
    %c64_i32_36 = arith.constant 64 : i32
    %96 = vector.broadcast %c64_i32_36 : i32 to vector<8x128xi32>
    %97 = arith.cmpi slt, %95, %96 : vector<8x128xi32>
    %98 = arith.andi %93, %97 : vector<8x128xi1>
    %cst_37 = arith.constant 0.000000e+00 : f32
    %99 = vector.broadcast %cst_37 : f32 to vector<8x128xf32>
    %100 = arith.select %98, %89, %99 : vector<8x128xi1>, vector<8x128xf32>
    %101 = tpu.concatenate %3, %16, %28, %3, %40, %52, %64, %76, %3, %88, %100 in 0 : vector<8x128xf32>, vector<8x128xf32>, vector<8x128xf32>, vector<8x128xf32>, vector<8x128xf32>, vector<8x128xf32>, vector<8x128xf32>, vector<8x128xf32>, vector<8x128xf32>, vector<8x128xf32>, vector<8x128xf32> -> vector<88x128xf32>
    %c0_38 = arith.constant 0 : index
    %c0_39 = arith.constant 0 : index
    %c0_40 = arith.constant 0 : index
    %102 = vector.load %arg1[%c0_38, %c0_39, %c0_40] : memref<3x24x88xf32, #tpu.memory_space<vmem>>, vector<1x24x88xf32>
    %103 = vector.shape_cast %102 : vector<1x24x88xf32> to vector<24x88xf32>
    %cst_41 = arith.constant dense<0.000000e+00> : vector<24x128xf32>
    %104 = tpu.matmul %103, %101, %cst_41 {dimension_numbers = #tpu.dot_dimension_numbers<[1], [0], [0], [1], [0, 0, 1, 1], [], []>} : vector<24x88xf32>, vector<88x128xf32>, vector<24x128xf32> -> vector<24x128xf32>
    %c0_42 = arith.constant 0 : index
    %c0_43 = arith.constant 0 : index
    %c0_44 = arith.constant 0 : index
    %105 = vector.load %arg2[%c0_42, %c0_43, %c0_44] : memref<3x24x1xf32, #tpu.memory_space<vmem>>, vector<1x24x1xf32>
    %106 = vector.shape_cast %105 : vector<1x24x1xf32> to vector<24x1xf32>
    %107 = vector.broadcast %106 : vector<24x1xf32> to vector<24x128xf32>
    %108 = arith.addf %104, %107 : vector<24x128xf32>
    %109 = vector.extract_strided_slice %108 {offsets = [0, 0], sizes = [8, 128], strides = [1, 1]} : vector<24x128xf32> to vector<8x128xf32>
    %110 = vector.extract_strided_slice %108 {offsets = [8, 0], sizes = [16, 128], strides = [1, 1]} : vector<24x128xf32> to vector<16x128xf32>
    %cst_45 = arith.constant 0.000000e+00 : f32
    %111 = vector.broadcast %cst_45 : f32 to vector<16x128xf32>
    %112 = arith.cmpf ogt, %110, %111 : vector<16x128xf32>
    %cst_46 = arith.constant 0.000000e+00 : f32
    %113 = vector.broadcast %cst_46 : f32 to vector<16x128xf32>
    %114 = arith.minimumf %110, %113 : vector<16x128xf32>
    %115 = math.exp %114 : vector<16x128xf32>
    %cst_47 = arith.constant 1.000000e+00 : f32
    %116 = vector.broadcast %cst_47 : f32 to vector<16x128xf32>
    %117 = arith.subf %115, %116 : vector<16x128xf32>
    %118 = arith.select %112, %110, %117 : vector<16x128xi1>, vector<16x128xf32>
    %c0_48 = arith.constant 0 : index
    %c0_49 = arith.constant 0 : index
    %c0_50 = arith.constant 0 : index
    %119 = vector.load %arg3[%c0_48, %c0_49, %c0_50] : memref<3x8x16xf32, #tpu.memory_space<vmem>>, vector<1x8x16xf32>
    %120 = vector.shape_cast %119 : vector<1x8x16xf32> to vector<8x16xf32>
    %cst_51 = arith.constant dense<0.000000e+00> : vector<8x128xf32>
    %121 = tpu.matmul %120, %118, %cst_51 {dimension_numbers = #tpu.dot_dimension_numbers<[1], [0], [0], [1], [0, 0, 1, 1], [], []>} : vector<8x16xf32>, vector<16x128xf32>, vector<8x128xf32> -> vector<8x128xf32>
    %c0_52 = arith.constant 0 : index
    %c0_53 = arith.constant 0 : index
    %c0_54 = arith.constant 0 : index
    %122 = vector.load %arg4[%c0_52, %c0_53, %c0_54] : memref<3x8x1xf32, #tpu.memory_space<vmem>>, vector<1x8x1xf32>
    %123 = vector.shape_cast %122 : vector<1x8x1xf32> to vector<8x1xf32>
    %124 = vector.broadcast %123 : vector<8x1xf32> to vector<8x128xf32>
    %125 = arith.addf %121, %124 : vector<8x128xf32>
    %126 = arith.addf %109, %125 : vector<8x128xf32>
    %127 = arith.addf %4, %125 : vector<8x128xf32>
    %c4_i32_55 = arith.constant 4 : i32
    %128 = tpu.dynamic_rotate %126 by %c4_i32_55 dim 1 : vector<8x128xf32>, i32 -> vector<8x128xf32>
    %c-4_i32_56 = arith.constant -4 : i32
    %129 = vector.broadcast %c-4_i32_56 : i32 to vector<8x128xi32>
    %130 = arith.addi %2, %129 : vector<8x128xi32>
    %c0_i32_57 = arith.constant 0 : i32
    %131 = vector.broadcast %c0_i32_57 : i32 to vector<8x128xi32>
    %132 = arith.cmpi sge, %130, %131 : vector<8x128xi32>
    %c-4_i32_58 = arith.constant -4 : i32
    %133 = vector.broadcast %c-4_i32_58 : i32 to vector<8x128xi32>
    %134 = arith.addi %2, %133 : vector<8x128xi32>
    %c64_i32_59 = arith.constant 64 : i32
    %135 = vector.broadcast %c64_i32_59 : i32 to vector<8x128xi32>
    %136 = arith.cmpi slt, %134, %135 : vector<8x128xi32>
    %137 = arith.andi %132, %136 : vector<8x128xi1>
    %cst_60 = arith.constant 0.000000e+00 : f32
    %138 = vector.broadcast %cst_60 : f32 to vector<8x128xf32>
    %139 = arith.select %137, %128, %138 : vector<8x128xi1>, vector<8x128xf32>
    %c2_i32_61 = arith.constant 2 : i32
    %140 = tpu.dynamic_rotate %126 by %c2_i32_61 dim 1 : vector<8x128xf32>, i32 -> vector<8x128xf32>
    %c-2_i32_62 = arith.constant -2 : i32
    %141 = vector.broadcast %c-2_i32_62 : i32 to vector<8x128xi32>
    %142 = arith.addi %2, %141 : vector<8x128xi32>
    %c0_i32_63 = arith.constant 0 : i32
    %143 = vector.broadcast %c0_i32_63 : i32 to vector<8x128xi32>
    %144 = arith.cmpi sge, %142, %143 : vector<8x128xi32>
    %c-2_i32_64 = arith.constant -2 : i32
    %145 = vector.broadcast %c-2_i32_64 : i32 to vector<8x128xi32>
    %146 = arith.addi %2, %145 : vector<8x128xi32>
    %c64_i32_65 = arith.constant 64 : i32
    %147 = vector.broadcast %c64_i32_65 : i32 to vector<8x128xi32>
    %148 = arith.cmpi slt, %146, %147 : vector<8x128xi32>
    %149 = arith.andi %144, %148 : vector<8x128xi1>
    %cst_66 = arith.constant 0.000000e+00 : f32
    %150 = vector.broadcast %cst_66 : f32 to vector<8x128xf32>
    %151 = arith.select %149, %140, %150 : vector<8x128xi1>, vector<8x128xf32>
    %c126_i32_67 = arith.constant 126 : i32
    %152 = tpu.dynamic_rotate %126 by %c126_i32_67 dim 1 : vector<8x128xf32>, i32 -> vector<8x128xf32>
    %c2_i32_68 = arith.constant 2 : i32
    %153 = vector.broadcast %c2_i32_68 : i32 to vector<8x128xi32>
    %154 = arith.addi %2, %153 : vector<8x128xi32>
    %c0_i32_69 = arith.constant 0 : i32
    %155 = vector.broadcast %c0_i32_69 : i32 to vector<8x128xi32>
    %156 = arith.cmpi sge, %154, %155 : vector<8x128xi32>
    %c2_i32_70 = arith.constant 2 : i32
    %157 = vector.broadcast %c2_i32_70 : i32 to vector<8x128xi32>
    %158 = arith.addi %2, %157 : vector<8x128xi32>
    %c64_i32_71 = arith.constant 64 : i32
    %159 = vector.broadcast %c64_i32_71 : i32 to vector<8x128xi32>
    %160 = arith.cmpi slt, %158, %159 : vector<8x128xi32>
    %161 = arith.andi %156, %160 : vector<8x128xi1>
    %cst_72 = arith.constant 0.000000e+00 : f32
    %162 = vector.broadcast %cst_72 : f32 to vector<8x128xf32>
    %163 = arith.select %161, %152, %162 : vector<8x128xi1>, vector<8x128xf32>
    %c124_i32_73 = arith.constant 124 : i32
    %164 = tpu.dynamic_rotate %126 by %c124_i32_73 dim 1 : vector<8x128xf32>, i32 -> vector<8x128xf32>
    %c4_i32_74 = arith.constant 4 : i32
    %165 = vector.broadcast %c4_i32_74 : i32 to vector<8x128xi32>
    %166 = arith.addi %2, %165 : vector<8x128xi32>
    %c0_i32_75 = arith.constant 0 : i32
    %167 = vector.broadcast %c0_i32_75 : i32 to vector<8x128xi32>
    %168 = arith.cmpi sge, %166, %167 : vector<8x128xi32>
    %c4_i32_76 = arith.constant 4 : i32
    %169 = vector.broadcast %c4_i32_76 : i32 to vector<8x128xi32>
    %170 = arith.addi %2, %169 : vector<8x128xi32>
    %c64_i32_77 = arith.constant 64 : i32
    %171 = vector.broadcast %c64_i32_77 : i32 to vector<8x128xi32>
    %172 = arith.cmpi slt, %170, %171 : vector<8x128xi32>
    %173 = arith.andi %168, %172 : vector<8x128xi1>
    %cst_78 = arith.constant 0.000000e+00 : f32
    %174 = vector.broadcast %cst_78 : f32 to vector<8x128xf32>
    %175 = arith.select %173, %164, %174 : vector<8x128xi1>, vector<8x128xf32>
    %c8_i32 = arith.constant 8 : i32
    %176 = tpu.dynamic_rotate %126 by %c8_i32 dim 1 : vector<8x128xf32>, i32 -> vector<8x128xf32>
    %c-8_i32 = arith.constant -8 : i32
    %177 = vector.broadcast %c-8_i32 : i32 to vector<8x128xi32>
    %178 = arith.addi %2, %177 : vector<8x128xi32>
    %c0_i32_79 = arith.constant 0 : i32
    %179 = vector.broadcast %c0_i32_79 : i32 to vector<8x128xi32>
    %180 = arith.cmpi sge, %178, %179 : vector<8x128xi32>
    %c-8_i32_80 = arith.constant -8 : i32
    %181 = vector.broadcast %c-8_i32_80 : i32 to vector<8x128xi32>
    %182 = arith.addi %2, %181 : vector<8x128xi32>
    %c64_i32_81 = arith.constant 64 : i32
    %183 = vector.broadcast %c64_i32_81 : i32 to vector<8x128xi32>
    %184 = arith.cmpi slt, %182, %183 : vector<8x128xi32>
    %185 = arith.andi %180, %184 : vector<8x128xi1>
    %cst_82 = arith.constant 0.000000e+00 : f32
    %186 = vector.broadcast %cst_82 : f32 to vector<8x128xf32>
    %187 = arith.select %185, %176, %186 : vector<8x128xi1>, vector<8x128xf32>
    %c4_i32_83 = arith.constant 4 : i32
    %188 = tpu.dynamic_rotate %126 by %c4_i32_83 dim 1 : vector<8x128xf32>, i32 -> vector<8x128xf32>
    %c-4_i32_84 = arith.constant -4 : i32
    %189 = vector.broadcast %c-4_i32_84 : i32 to vector<8x128xi32>
    %190 = arith.addi %2, %189 : vector<8x128xi32>
    %c0_i32_85 = arith.constant 0 : i32
    %191 = vector.broadcast %c0_i32_85 : i32 to vector<8x128xi32>
    %192 = arith.cmpi sge, %190, %191 : vector<8x128xi32>
    %c-4_i32_86 = arith.constant -4 : i32
    %193 = vector.broadcast %c-4_i32_86 : i32 to vector<8x128xi32>
    %194 = arith.addi %2, %193 : vector<8x128xi32>
    %c64_i32_87 = arith.constant 64 : i32
    %195 = vector.broadcast %c64_i32_87 : i32 to vector<8x128xi32>
    %196 = arith.cmpi slt, %194, %195 : vector<8x128xi32>
    %197 = arith.andi %192, %196 : vector<8x128xi1>
    %cst_88 = arith.constant 0.000000e+00 : f32
    %198 = vector.broadcast %cst_88 : f32 to vector<8x128xf32>
    %199 = arith.select %197, %188, %198 : vector<8x128xi1>, vector<8x128xf32>
    %c124_i32_89 = arith.constant 124 : i32
    %200 = tpu.dynamic_rotate %126 by %c124_i32_89 dim 1 : vector<8x128xf32>, i32 -> vector<8x128xf32>
    %c4_i32_90 = arith.constant 4 : i32
    %201 = vector.broadcast %c4_i32_90 : i32 to vector<8x128xi32>
    %202 = arith.addi %2, %201 : vector<8x128xi32>
    %c0_i32_91 = arith.constant 0 : i32
    %203 = vector.broadcast %c0_i32_91 : i32 to vector<8x128xi32>
    %204 = arith.cmpi sge, %202, %203 : vector<8x128xi32>
    %c4_i32_92 = arith.constant 4 : i32
    %205 = vector.broadcast %c4_i32_92 : i32 to vector<8x128xi32>
    %206 = arith.addi %2, %205 : vector<8x128xi32>
    %c64_i32_93 = arith.constant 64 : i32
    %207 = vector.broadcast %c64_i32_93 : i32 to vector<8x128xi32>
    %208 = arith.cmpi slt, %206, %207 : vector<8x128xi32>
    %209 = arith.andi %204, %208 : vector<8x128xi1>
    %cst_94 = arith.constant 0.000000e+00 : f32
    %210 = vector.broadcast %cst_94 : f32 to vector<8x128xf32>
    %211 = arith.select %209, %200, %210 : vector<8x128xi1>, vector<8x128xf32>
    %c120_i32 = arith.constant 120 : i32
    %212 = tpu.dynamic_rotate %126 by %c120_i32 dim 1 : vector<8x128xf32>, i32 -> vector<8x128xf32>
    %c8_i32_95 = arith.constant 8 : i32
    %213 = vector.broadcast %c8_i32_95 : i32 to vector<8x128xi32>
    %214 = arith.addi %2, %213 : vector<8x128xi32>
    %c0_i32_96 = arith.constant 0 : i32
    %215 = vector.broadcast %c0_i32_96 : i32 to vector<8x128xi32>
    %216 = arith.cmpi sge, %214, %215 : vector<8x128xi32>
    %c8_i32_97 = arith.constant 8 : i32
    %217 = vector.broadcast %c8_i32_97 : i32 to vector<8x128xi32>
    %218 = arith.addi %2, %217 : vector<8x128xi32>
    %c64_i32_98 = arith.constant 64 : i32
    %219 = vector.broadcast %c64_i32_98 : i32 to vector<8x128xi32>
    %220 = arith.cmpi slt, %218, %219 : vector<8x128xi32>
    %221 = arith.andi %216, %220 : vector<8x128xi1>
    %cst_99 = arith.constant 0.000000e+00 : f32
    %222 = vector.broadcast %cst_99 : f32 to vector<8x128xf32>
    %223 = arith.select %221, %212, %222 : vector<8x128xi1>, vector<8x128xf32>
    %224 = tpu.concatenate %126, %139, %151, %126, %163, %175, %187, %199, %126, %211, %223 in 0 : vector<8x128xf32>, vector<8x128xf32>, vector<8x128xf32>, vector<8x128xf32>, vector<8x128xf32>, vector<8x128xf32>, vector<8x128xf32>, vector<8x128xf32>, vector<8x128xf32>, vector<8x128xf32>, vector<8x128xf32> -> vector<88x128xf32>
    %c1 = arith.constant 1 : index
    %c0_100 = arith.constant 0 : index
    %c0_101 = arith.constant 0 : index
    %225 = vector.load %arg1[%c1, %c0_100, %c0_101] : memref<3x24x88xf32, #tpu.memory_space<vmem>>, vector<1x24x88xf32>
    %226 = vector.shape_cast %225 : vector<1x24x88xf32> to vector<24x88xf32>
    %cst_102 = arith.constant dense<0.000000e+00> : vector<24x128xf32>
    %227 = tpu.matmul %226, %224, %cst_102 {dimension_numbers = #tpu.dot_dimension_numbers<[1], [0], [0], [1], [0, 0, 1, 1], [], []>} : vector<24x88xf32>, vector<88x128xf32>, vector<24x128xf32> -> vector<24x128xf32>
    %c1_103 = arith.constant 1 : index
    %c0_104 = arith.constant 0 : index
    %c0_105 = arith.constant 0 : index
    %228 = vector.load %arg2[%c1_103, %c0_104, %c0_105] : memref<3x24x1xf32, #tpu.memory_space<vmem>>, vector<1x24x1xf32>
    %229 = vector.shape_cast %228 : vector<1x24x1xf32> to vector<24x1xf32>
    %230 = vector.broadcast %229 : vector<24x1xf32> to vector<24x128xf32>
    %231 = arith.addf %227, %230 : vector<24x128xf32>
    %232 = vector.extract_strided_slice %231 {offsets = [0, 0], sizes = [8, 128], strides = [1, 1]} : vector<24x128xf32> to vector<8x128xf32>
    %233 = vector.extract_strided_slice %231 {offsets = [8, 0], sizes = [16, 128], strides = [1, 1]} : vector<24x128xf32> to vector<16x128xf32>
    %cst_106 = arith.constant 0.000000e+00 : f32
    %234 = vector.broadcast %cst_106 : f32 to vector<16x128xf32>
    %235 = arith.cmpf ogt, %233, %234 : vector<16x128xf32>
    %cst_107 = arith.constant 0.000000e+00 : f32
    %236 = vector.broadcast %cst_107 : f32 to vector<16x128xf32>
    %237 = arith.minimumf %233, %236 : vector<16x128xf32>
    %238 = math.exp %237 : vector<16x128xf32>
    %cst_108 = arith.constant 1.000000e+00 : f32
    %239 = vector.broadcast %cst_108 : f32 to vector<16x128xf32>
    %240 = arith.subf %238, %239 : vector<16x128xf32>
    %241 = arith.select %235, %233, %240 : vector<16x128xi1>, vector<16x128xf32>
    %c1_109 = arith.constant 1 : index
    %c0_110 = arith.constant 0 : index
    %c0_111 = arith.constant 0 : index
    %242 = vector.load %arg3[%c1_109, %c0_110, %c0_111] : memref<3x8x16xf32, #tpu.memory_space<vmem>>, vector<1x8x16xf32>
    %243 = vector.shape_cast %242 : vector<1x8x16xf32> to vector<8x16xf32>
    %cst_112 = arith.constant dense<0.000000e+00> : vector<8x128xf32>
    %244 = tpu.matmul %243, %241, %cst_112 {dimension_numbers = #tpu.dot_dimension_numbers<[1], [0], [0], [1], [0, 0, 1, 1], [], []>} : vector<8x16xf32>, vector<16x128xf32>, vector<8x128xf32> -> vector<8x128xf32>
    %c1_113 = arith.constant 1 : index
    %c0_114 = arith.constant 0 : index
    %c0_115 = arith.constant 0 : index
    %245 = vector.load %arg4[%c1_113, %c0_114, %c0_115] : memref<3x8x1xf32, #tpu.memory_space<vmem>>, vector<1x8x1xf32>
    %246 = vector.shape_cast %245 : vector<1x8x1xf32> to vector<8x1xf32>
    %247 = vector.broadcast %246 : vector<8x1xf32> to vector<8x128xf32>
    %248 = arith.addf %244, %247 : vector<8x128xf32>
    %249 = arith.addf %232, %248 : vector<8x128xf32>
    %250 = arith.addf %127, %248 : vector<8x128xf32>
    %c8_i32_116 = arith.constant 8 : i32
    %251 = tpu.dynamic_rotate %249 by %c8_i32_116 dim 1 : vector<8x128xf32>, i32 -> vector<8x128xf32>
    %c-8_i32_117 = arith.constant -8 : i32
    %252 = vector.broadcast %c-8_i32_117 : i32 to vector<8x128xi32>
    %253 = arith.addi %2, %252 : vector<8x128xi32>
    %c0_i32_118 = arith.constant 0 : i32
    %254 = vector.broadcast %c0_i32_118 : i32 to vector<8x128xi32>
    %255 = arith.cmpi sge, %253, %254 : vector<8x128xi32>
    %c-8_i32_119 = arith.constant -8 : i32
    %256 = vector.broadcast %c-8_i32_119 : i32 to vector<8x128xi32>
    %257 = arith.addi %2, %256 : vector<8x128xi32>
    %c64_i32_120 = arith.constant 64 : i32
    %258 = vector.broadcast %c64_i32_120 : i32 to vector<8x128xi32>
    %259 = arith.cmpi slt, %257, %258 : vector<8x128xi32>
    %260 = arith.andi %255, %259 : vector<8x128xi1>
    %cst_121 = arith.constant 0.000000e+00 : f32
    %261 = vector.broadcast %cst_121 : f32 to vector<8x128xf32>
    %262 = arith.select %260, %251, %261 : vector<8x128xi1>, vector<8x128xf32>
    %c4_i32_122 = arith.constant 4 : i32
    %263 = tpu.dynamic_rotate %249 by %c4_i32_122 dim 1 : vector<8x128xf32>, i32 -> vector<8x128xf32>
    %c-4_i32_123 = arith.constant -4 : i32
    %264 = vector.broadcast %c-4_i32_123 : i32 to vector<8x128xi32>
    %265 = arith.addi %2, %264 : vector<8x128xi32>
    %c0_i32_124 = arith.constant 0 : i32
    %266 = vector.broadcast %c0_i32_124 : i32 to vector<8x128xi32>
    %267 = arith.cmpi sge, %265, %266 : vector<8x128xi32>
    %c-4_i32_125 = arith.constant -4 : i32
    %268 = vector.broadcast %c-4_i32_125 : i32 to vector<8x128xi32>
    %269 = arith.addi %2, %268 : vector<8x128xi32>
    %c64_i32_126 = arith.constant 64 : i32
    %270 = vector.broadcast %c64_i32_126 : i32 to vector<8x128xi32>
    %271 = arith.cmpi slt, %269, %270 : vector<8x128xi32>
    %272 = arith.andi %267, %271 : vector<8x128xi1>
    %cst_127 = arith.constant 0.000000e+00 : f32
    %273 = vector.broadcast %cst_127 : f32 to vector<8x128xf32>
    %274 = arith.select %272, %263, %273 : vector<8x128xi1>, vector<8x128xf32>
    %c124_i32_128 = arith.constant 124 : i32
    %275 = tpu.dynamic_rotate %249 by %c124_i32_128 dim 1 : vector<8x128xf32>, i32 -> vector<8x128xf32>
    %c4_i32_129 = arith.constant 4 : i32
    %276 = vector.broadcast %c4_i32_129 : i32 to vector<8x128xi32>
    %277 = arith.addi %2, %276 : vector<8x128xi32>
    %c0_i32_130 = arith.constant 0 : i32
    %278 = vector.broadcast %c0_i32_130 : i32 to vector<8x128xi32>
    %279 = arith.cmpi sge, %277, %278 : vector<8x128xi32>
    %c4_i32_131 = arith.constant 4 : i32
    %280 = vector.broadcast %c4_i32_131 : i32 to vector<8x128xi32>
    %281 = arith.addi %2, %280 : vector<8x128xi32>
    %c64_i32_132 = arith.constant 64 : i32
    %282 = vector.broadcast %c64_i32_132 : i32 to vector<8x128xi32>
    %283 = arith.cmpi slt, %281, %282 : vector<8x128xi32>
    %284 = arith.andi %279, %283 : vector<8x128xi1>
    %cst_133 = arith.constant 0.000000e+00 : f32
    %285 = vector.broadcast %cst_133 : f32 to vector<8x128xf32>
    %286 = arith.select %284, %275, %285 : vector<8x128xi1>, vector<8x128xf32>
    %c120_i32_134 = arith.constant 120 : i32
    %287 = tpu.dynamic_rotate %249 by %c120_i32_134 dim 1 : vector<8x128xf32>, i32 -> vector<8x128xf32>
    %c8_i32_135 = arith.constant 8 : i32
    %288 = vector.broadcast %c8_i32_135 : i32 to vector<8x128xi32>
    %289 = arith.addi %2, %288 : vector<8x128xi32>
    %c0_i32_136 = arith.constant 0 : i32
    %290 = vector.broadcast %c0_i32_136 : i32 to vector<8x128xi32>
    %291 = arith.cmpi sge, %289, %290 : vector<8x128xi32>
    %c8_i32_137 = arith.constant 8 : i32
    %292 = vector.broadcast %c8_i32_137 : i32 to vector<8x128xi32>
    %293 = arith.addi %2, %292 : vector<8x128xi32>
    %c64_i32_138 = arith.constant 64 : i32
    %294 = vector.broadcast %c64_i32_138 : i32 to vector<8x128xi32>
    %295 = arith.cmpi slt, %293, %294 : vector<8x128xi32>
    %296 = arith.andi %291, %295 : vector<8x128xi1>
    %cst_139 = arith.constant 0.000000e+00 : f32
    %297 = vector.broadcast %cst_139 : f32 to vector<8x128xf32>
    %298 = arith.select %296, %287, %297 : vector<8x128xi1>, vector<8x128xf32>
    %c16_i32 = arith.constant 16 : i32
    %299 = tpu.dynamic_rotate %249 by %c16_i32 dim 1 : vector<8x128xf32>, i32 -> vector<8x128xf32>
    %c-16_i32 = arith.constant -16 : i32
    %300 = vector.broadcast %c-16_i32 : i32 to vector<8x128xi32>
    %301 = arith.addi %2, %300 : vector<8x128xi32>
    %c0_i32_140 = arith.constant 0 : i32
    %302 = vector.broadcast %c0_i32_140 : i32 to vector<8x128xi32>
    %303 = arith.cmpi sge, %301, %302 : vector<8x128xi32>
    %c-16_i32_141 = arith.constant -16 : i32
    %304 = vector.broadcast %c-16_i32_141 : i32 to vector<8x128xi32>
    %305 = arith.addi %2, %304 : vector<8x128xi32>
    %c64_i32_142 = arith.constant 64 : i32
    %306 = vector.broadcast %c64_i32_142 : i32 to vector<8x128xi32>
    %307 = arith.cmpi slt, %305, %306 : vector<8x128xi32>
    %308 = arith.andi %303, %307 : vector<8x128xi1>
    %cst_143 = arith.constant 0.000000e+00 : f32
    %309 = vector.broadcast %cst_143 : f32 to vector<8x128xf32>
    %310 = arith.select %308, %299, %309 : vector<8x128xi1>, vector<8x128xf32>
    %c8_i32_144 = arith.constant 8 : i32
    %311 = tpu.dynamic_rotate %249 by %c8_i32_144 dim 1 : vector<8x128xf32>, i32 -> vector<8x128xf32>
    %c-8_i32_145 = arith.constant -8 : i32
    %312 = vector.broadcast %c-8_i32_145 : i32 to vector<8x128xi32>
    %313 = arith.addi %2, %312 : vector<8x128xi32>
    %c0_i32_146 = arith.constant 0 : i32
    %314 = vector.broadcast %c0_i32_146 : i32 to vector<8x128xi32>
    %315 = arith.cmpi sge, %313, %314 : vector<8x128xi32>
    %c-8_i32_147 = arith.constant -8 : i32
    %316 = vector.broadcast %c-8_i32_147 : i32 to vector<8x128xi32>
    %317 = arith.addi %2, %316 : vector<8x128xi32>
    %c64_i32_148 = arith.constant 64 : i32
    %318 = vector.broadcast %c64_i32_148 : i32 to vector<8x128xi32>
    %319 = arith.cmpi slt, %317, %318 : vector<8x128xi32>
    %320 = arith.andi %315, %319 : vector<8x128xi1>
    %cst_149 = arith.constant 0.000000e+00 : f32
    %321 = vector.broadcast %cst_149 : f32 to vector<8x128xf32>
    %322 = arith.select %320, %311, %321 : vector<8x128xi1>, vector<8x128xf32>
    %c120_i32_150 = arith.constant 120 : i32
    %323 = tpu.dynamic_rotate %249 by %c120_i32_150 dim 1 : vector<8x128xf32>, i32 -> vector<8x128xf32>
    %c8_i32_151 = arith.constant 8 : i32
    %324 = vector.broadcast %c8_i32_151 : i32 to vector<8x128xi32>
    %325 = arith.addi %2, %324 : vector<8x128xi32>
    %c0_i32_152 = arith.constant 0 : i32
    %326 = vector.broadcast %c0_i32_152 : i32 to vector<8x128xi32>
    %327 = arith.cmpi sge, %325, %326 : vector<8x128xi32>
    %c8_i32_153 = arith.constant 8 : i32
    %328 = vector.broadcast %c8_i32_153 : i32 to vector<8x128xi32>
    %329 = arith.addi %2, %328 : vector<8x128xi32>
    %c64_i32_154 = arith.constant 64 : i32
    %330 = vector.broadcast %c64_i32_154 : i32 to vector<8x128xi32>
    %331 = arith.cmpi slt, %329, %330 : vector<8x128xi32>
    %332 = arith.andi %327, %331 : vector<8x128xi1>
    %cst_155 = arith.constant 0.000000e+00 : f32
    %333 = vector.broadcast %cst_155 : f32 to vector<8x128xf32>
    %334 = arith.select %332, %323, %333 : vector<8x128xi1>, vector<8x128xf32>
    %c112_i32 = arith.constant 112 : i32
    %335 = tpu.dynamic_rotate %249 by %c112_i32 dim 1 : vector<8x128xf32>, i32 -> vector<8x128xf32>
    %c16_i32_156 = arith.constant 16 : i32
    %336 = vector.broadcast %c16_i32_156 : i32 to vector<8x128xi32>
    %337 = arith.addi %2, %336 : vector<8x128xi32>
    %c0_i32_157 = arith.constant 0 : i32
    %338 = vector.broadcast %c0_i32_157 : i32 to vector<8x128xi32>
    %339 = arith.cmpi sge, %337, %338 : vector<8x128xi32>
    %c16_i32_158 = arith.constant 16 : i32
    %340 = vector.broadcast %c16_i32_158 : i32 to vector<8x128xi32>
    %341 = arith.addi %2, %340 : vector<8x128xi32>
    %c64_i32_159 = arith.constant 64 : i32
    %342 = vector.broadcast %c64_i32_159 : i32 to vector<8x128xi32>
    %343 = arith.cmpi slt, %341, %342 : vector<8x128xi32>
    %344 = arith.andi %339, %343 : vector<8x128xi1>
    %cst_160 = arith.constant 0.000000e+00 : f32
    %345 = vector.broadcast %cst_160 : f32 to vector<8x128xf32>
    %346 = arith.select %344, %335, %345 : vector<8x128xi1>, vector<8x128xf32>
    %347 = tpu.concatenate %249, %262, %274, %249, %286, %298, %310, %322, %249, %334, %346 in 0 : vector<8x128xf32>, vector<8x128xf32>, vector<8x128xf32>, vector<8x128xf32>, vector<8x128xf32>, vector<8x128xf32>, vector<8x128xf32>, vector<8x128xf32>, vector<8x128xf32>, vector<8x128xf32>, vector<8x128xf32> -> vector<88x128xf32>
    %c2 = arith.constant 2 : index
    %c0_161 = arith.constant 0 : index
    %c0_162 = arith.constant 0 : index
    %348 = vector.load %arg1[%c2, %c0_161, %c0_162] : memref<3x24x88xf32, #tpu.memory_space<vmem>>, vector<1x24x88xf32>
    %349 = vector.shape_cast %348 : vector<1x24x88xf32> to vector<24x88xf32>
    %cst_163 = arith.constant dense<0.000000e+00> : vector<24x128xf32>
    %350 = tpu.matmul %349, %347, %cst_163 {dimension_numbers = #tpu.dot_dimension_numbers<[1], [0], [0], [1], [0, 0, 1, 1], [], []>} : vector<24x88xf32>, vector<88x128xf32>, vector<24x128xf32> -> vector<24x128xf32>
    %c2_164 = arith.constant 2 : index
    %c0_165 = arith.constant 0 : index
    %c0_166 = arith.constant 0 : index
    %351 = vector.load %arg2[%c2_164, %c0_165, %c0_166] : memref<3x24x1xf32, #tpu.memory_space<vmem>>, vector<1x24x1xf32>
    %352 = vector.shape_cast %351 : vector<1x24x1xf32> to vector<24x1xf32>
    %353 = vector.broadcast %352 : vector<24x1xf32> to vector<24x128xf32>
    %354 = arith.addf %350, %353 : vector<24x128xf32>
    %355 = vector.extract_strided_slice %354 {offsets = [0, 0], sizes = [8, 128], strides = [1, 1]} : vector<24x128xf32> to vector<8x128xf32>
    %356 = vector.extract_strided_slice %354 {offsets = [8, 0], sizes = [16, 128], strides = [1, 1]} : vector<24x128xf32> to vector<16x128xf32>
    %cst_167 = arith.constant 0.000000e+00 : f32
    %357 = vector.broadcast %cst_167 : f32 to vector<16x128xf32>
    %358 = arith.cmpf ogt, %356, %357 : vector<16x128xf32>
    %cst_168 = arith.constant 0.000000e+00 : f32
    %359 = vector.broadcast %cst_168 : f32 to vector<16x128xf32>
    %360 = arith.minimumf %356, %359 : vector<16x128xf32>
    %361 = math.exp %360 : vector<16x128xf32>
    %cst_169 = arith.constant 1.000000e+00 : f32
    %362 = vector.broadcast %cst_169 : f32 to vector<16x128xf32>
    %363 = arith.subf %361, %362 : vector<16x128xf32>
    %364 = arith.select %358, %356, %363 : vector<16x128xi1>, vector<16x128xf32>
    %c2_170 = arith.constant 2 : index
    %c0_171 = arith.constant 0 : index
    %c0_172 = arith.constant 0 : index
    %365 = vector.load %arg3[%c2_170, %c0_171, %c0_172] : memref<3x8x16xf32, #tpu.memory_space<vmem>>, vector<1x8x16xf32>
    %366 = vector.shape_cast %365 : vector<1x8x16xf32> to vector<8x16xf32>
    %cst_173 = arith.constant dense<0.000000e+00> : vector<8x128xf32>
    %367 = tpu.matmul %366, %364, %cst_173 {dimension_numbers = #tpu.dot_dimension_numbers<[1], [0], [0], [1], [0, 0, 1, 1], [], []>} : vector<8x16xf32>, vector<16x128xf32>, vector<8x128xf32> -> vector<8x128xf32>
    %c2_174 = arith.constant 2 : index
    %c0_175 = arith.constant 0 : index
    %c0_176 = arith.constant 0 : index
    %368 = vector.load %arg4[%c2_174, %c0_175, %c0_176] : memref<3x8x1xf32, #tpu.memory_space<vmem>>, vector<1x8x1xf32>
    %369 = vector.shape_cast %368 : vector<1x8x1xf32> to vector<8x1xf32>
    %370 = vector.broadcast %369 : vector<8x1xf32> to vector<8x128xf32>
    %371 = arith.addf %367, %370 : vector<8x128xf32>
    %372 = arith.addf %355, %371 : vector<8x128xf32>
    %373 = arith.addf %250, %371 : vector<8x128xf32>
    %cst_177 = arith.constant 0.000000e+00 : f32
    %374 = vector.broadcast %cst_177 : f32 to vector<8x128xf32>
    %375 = arith.cmpf ogt, %372, %374 : vector<8x128xf32>
    %cst_178 = arith.constant 0.000000e+00 : f32
    %376 = vector.broadcast %cst_178 : f32 to vector<8x128xf32>
    %377 = arith.minimumf %372, %376 : vector<8x128xf32>
    %378 = math.exp %377 : vector<8x128xf32>
    %cst_179 = arith.constant 1.000000e+00 : f32
    %379 = vector.broadcast %cst_179 : f32 to vector<8x128xf32>
    %380 = arith.subf %378, %379 : vector<8x128xf32>
    %381 = arith.select %375, %372, %380 : vector<8x128xi1>, vector<8x128xf32>
    %c0_180 = arith.constant 0 : index
    %c0_181 = arith.constant 0 : index
    %382 = vector.load %arg5[%c0_180, %c0_181] : memref<8x128xf32, #tpu.memory_space<vmem>>, vector<8x128xf32>
    tpu.vector_store %arg5[%c0_180, %c0_181], %381 {strides = array<i32>} : memref<8x128xf32, #tpu.memory_space<vmem>>, vector<8x128xf32>,
    %c0_182 = arith.constant 0 : index
    %c0_183 = arith.constant 0 : index
    %383 = vector.load %arg6[%c0_182, %c0_183] : memref<8x128xf32, #tpu.memory_space<vmem>>, vector<8x128xf32>
    tpu.vector_store %arg6[%c0_182, %c0_183], %373 {strides = array<i32>} : memref<8x128xf32, #tpu.memory_space<vmem>>, vector<8x128xf32>,
    return
  }
}

</mosaic_0001>

<llo_original>
// kernel: tcn_forward_pallas.1
$region0: #{tcn_forward_pallas.1}
  #allocation0 [shape = 'u32[]', space=smem, size = 0x4, offset = 0x4, fixed_abs, tag = 'smem constant byte address 0x4 - core index']
  #allocation1 [shape = 'u32[144,128]{1,0:T(1,128)}', space=vmem, size = 0x12000, scoped, tag = 'internal scratch']
  %s0 = inlined_call_operand.vmem [shape: f32[8,128], index: 0, kind: input, shape index: {}]
  %s1 = inlined_call_operand.vmem [shape: f32[3,24,88], index: 1, kind: input, shape index: {}]
  %s2 = inlined_call_operand.vmem [shape: f32[3,24,1], index: 2, kind: input, shape index: {}]
  %s3 = inlined_call_operand.vmem [shape: f32[3,8,16], index: 3, kind: input, shape index: {}]
  %s4 = inlined_call_operand.vmem [shape: f32[3,8,1], index: 4, kind: input, shape index: {}]
  %s5 = inlined_call_operand.vmem [shape: f32[8,128], index: 5, kind: output, shape index: {0}]
  %s6 = inlined_call_operand.vmem [shape: f32[8,128], index: 6, kind: output, shape index: {1}]
  %7 = xla_tuple %s5, %s6
  %s8 = sld [smem:[#allocation0]]
  $region38: #{tcn_forward_pallas.1} parent=0
    _
  %s10 = ssub.s32 1, %s8
  %s11 = scalar_select 0, %s10, %s8
  // Predicated region
  $region2: #{tcn_forward_pallas.1} parent=0 // pred_check
    _
  $region3: #{tcn_forward_pallas.1} parent=0 // pred_check_branch
    %13 = sbr.rel (0) target = $region5
  $region4: #{tcn_forward_pallas.1} parent=0 // pred_region
    _
  $region5: #{tcn_forward_pallas.1} parent=0 // pred_fallthru
    _
  // Predicated region
  $region6: #{tcn_forward_pallas.1} parent=0 // pred_check
    _
  $region7: #{tcn_forward_pallas.1} parent=0 // pred_check_branch
    %15 = sbr.rel (0) target = $region9
  $region8: #{tcn_forward_pallas.1} parent=0 // pred_region
    _
  $region9: #{tcn_forward_pallas.1} parent=0 // pred_fallthru
    _
  // Predicated region
  $region10: #{tcn_forward_pallas.1} parent=0 // pred_check
    _
  $region11: #{tcn_forward_pallas.1} parent=0 // pred_check_branch
    %17 = sbr.rel (0) target = $region13
  $region12: #{tcn_forward_pallas.1} parent=0 // pred_region
    _
  $region13: #{tcn_forward_pallas.1} parent=0 // pred_fallthru
    _
  // Predicated region
  $region14: #{tcn_forward_pallas.1} parent=0 // pred_check
    _
  $region15: #{tcn_forward_pallas.1} parent=0 // pred_check_branch
    %19 = sbr.rel (0) target = $region17
  $region16: #{tcn_forward_pallas.1} parent=0 // pred_region
    _
  $region17: #{tcn_forward_pallas.1} parent=0 // pred_fallthru
    _
  // Predicated region
  $region18: #{tcn_forward_pallas.1} parent=0 // pred_check
    _
  $region19: #{tcn_forward_pallas.1} parent=0 // pred_check_branch
    %21 = sbr.rel (0) target = $region21
  $region20: #{tcn_forward_pallas.1} parent=0 // pred_region
    _
  $region21: #{tcn_forward_pallas.1} parent=0 // pred_fallthru
    _
  %v22 = vlaneseq
  %v23 = vand.u32 %v22, 127
  %v24 = vand.u32 %v23, 63
  %v25 = vld [vmem:[%s0] sm:$0xff]
  %26 = vrot.lane.b32.xlu0 %v25, 2
  %v27 = vpop.permute.xlu0 %26
  %v28 = vadd.s32 %v24, 4294967294
  %vm29 = vcmp.ge.s32.totalorder %v28, 0
  %vm30 = vcmp.lt.s32.totalorder %v28, 64
  %vm31 = vmand %vm29, %vm30
  %v32 = vsel %vm31, %v27, 0.0
  %33 = vrot.lane.b32.xlu0 %v25, 1
  %v34 = vpop.permute.xlu0 %33
  %v35 = vadd.s32 %v24, 4294967295
  %vm36 = vcmp.ge.s32.totalorder %v35, 0
  %vm37 = vcmp.lt.s32.totalorder %v35, 64
  %vm38 = vmand %vm36, %vm37
  %v39 = vsel %vm38, %v34, 0.0
  %40 = vrot.lane.b32.xlu0 %v25, 127
  %v41 = vpop.permute.xlu0 %40
  %v42 = vadd.s32 %v24, 1
  %vm43 = vcmp.ge.s32.totalorder %v42, 0
  %vm44 = vcmp.lt.s32.totalorder %v42, 64
  %vm45 = vmand %vm43, %vm44
  %v46 = vsel %vm45, %v41, 0.0
  %47 = vrot.lane.b32.xlu0 %v25, 126
  %v48 = vpop.permute.xlu0 %47
  %v49 = vadd.s32 %v24, 2
  %vm50 = vcmp.ge.s32.totalorder %v49, 0
  %vm51 = vcmp.lt.s32.totalorder %v49, 64
  %vm52 = vmand %vm50, %vm51
  %v53 = vsel %vm52, %v48, 0.0
  %54 = vrot.lane.b32.xlu0 %v25, 4
  %v55 = vpop.permute.xlu0 %54
  %v56 = vadd.s32 %v24, 4294967292
  %vm57 = vcmp.ge.s32.totalorder %v56, 0
  %vm58 = vcmp.lt.s32.totalorder %v56, 64
  %vm59 = vmand %vm57, %vm58
  %v60 = vsel %vm59, %v55, 0.0
  %61 = vrot.lane.b32.xlu0 %v25, 124
  %v62 = vpop.permute.xlu0 %61
  %v63 = vadd.s32 %v24, 4
  %vm64 = vcmp.ge.s32.totalorder %v63, 0
  %vm65 = vcmp.lt.s32.totalorder %v63, 64
  %vm66 = vmand %vm64, %vm65
  %v67 = vsel %vm66, %v62, 0.0
  %v68 = vld [vmem:[%s1] sm:$0xff]
  %v69 = vld [vmem:[%s1 + $0x8] sm:$0xff]
  %v70 = vld [vmem:[%s1 + $0x10] sm:$0xff]
  %v71 = vld [vmem:[%s2] sm:$0xff]
  %v72 = vld [vmem:[%s2 + $0x8] sm:$0xff]
  %v73 = vld [vmem:[%s2 + $0x10] sm:$0xff]
  %75 = vset.pattern.permute.xlu0 0
  %76 = vperm.xlu0 %75, %v71
  %v77 = vpop.permute.xlu0 %76
  %80 = vset.pattern.permute.xlu0 0
  %81 = vperm.xlu0 %80, %v72
  %v82 = vpop.permute.xlu0 %81
  %85 = vset.pattern.permute.xlu0 0
  %86 = vperm.xlu0 %85, %v73
  %v87 = vpop.permute.xlu0 %86
  %vm89 = vcmask 719872
  %v91 = vsel %vm89, %v68, 0
  %v94 = vsel %vm89, %v69, 0
  %v97 = vsel %vm89, %v70, 0
  %99 = vmatprep.subr.mxu0 0.0
  %100 = vmatpush1.msra.mxu0 %v25
  %101 = vmatprep.subr.mxu0 0.0
  %102 = vmatpush1.msra.mxu0 %v32
  %103 = vmatprep.subr.mxu0 0.0
  %104 = vmatpush1.msra.mxu0 %v39
  %105 = vmatprep.subr.mxu0 0.0
  %106 = vmatpush1.msra.mxu0 %v25
  %107 = vmatprep.subr.mxu0 0.0
  %108 = vmatpush1.msra.mxu0 %v46
  %109 = vmatprep.subr.mxu0 0.0
  %110 = vmatpush1.msra.mxu0 %v53
  %111 = vmatprep.subr.mxu0 0.0
  %112 = vmatpush1.msra.mxu0 %v60
  %113 = vmatprep.subr.mxu0 0.0
  %114 = vmatpush1.msra.mxu0 %v32
  %115 = vmatprep.subr.mxu0 0.0
  %116 = vmatpush1.msra.mxu0 %v25
  %117 = vmatprep.subr.mxu0 0.0
  %118 = vmatpush1.msra.mxu0 %v53
  %119 = vmatprep.subr.mxu0 0.0
  %120 = vmatpush1.msra.mxu0 %v67
  %121 = vmatprep.subr.mxu0 0.0
  %122 = vmatpush1.msra.mxu0 0.0
  %123 = vmatprep.subr.mxu0 0.0
  %124 = vmatpush1.msra.mxu0 0.0
  %125 = vmatprep.subr.mxu0 0.0
  %126 = vmatpush1.msra.mxu0 0.0
  %127 = vmatprep.subr.mxu0 0.0
  %128 = vmatpush1.msra.mxu0 0.0
  %129 = vmatprep.subr.mxu0 0.0
  %130 = vmatpush1.msra.mxu0 0.0
  %131 = vmatprep.subr.mxu0 0.0
  %132 = vmatpush1.msra.mxu0 0.0
  %133 = vmatprep.subr.mxu0 0.0
  %134 = vmatpush1.msra.mxu0 0.0
  %135 = vmatprep.subr.mxu0 0.0
  %136 = vmatpush1.msra.mxu0 0.0
  %137 = vmatprep.subr.mxu0 0.0
  %138 = vmatpush1.msra.mxu0 0.0
  %139 = vmatprep.subr.mxu0 0.0
  %140 = vmatpush1.msra.mxu0 0.0
  %141 = vmatprep.subr.mxu0 0.0
  %142 = vmatpush1.msra.mxu0 0.0
  %143 = vmatprep.subr.mxu0 0.0
  %144 = vmatpush1.msra.mxu0 0.0
  %145 = vmatprep.subr.mxu0 0.0
  %146 = vmatpush1.msra.mxu0 0.0
  %147 = vmatprep.subr.mxu0 0.0
  %148 = vmatpush1.msra.mxu0 0.0
  %149 = vmatprep.subr.mxu0 0.0
  %150 = vmatpush1.msra.mxu0 0.0
  %151 = vmatprep.subr.mxu0 0.0
  %152 = vmatpush1.msra.mxu0 0.0
  %153 = vmatprep.subr.mxu0 0.0
  %154 = vmatpush1.msra.mxu0 0.0
  %155 = vmatprep.subr.mxu0 0.0
  %156 = vmatpush1.msra.mxu0 0.0
  %157 = vmatprep.subr.mxu0 0.0
  %158 = vmatpush1.msra.mxu0 0.0
  %159 = vmatprep.subr.mxu0 0.0
  %160 = vmatpush1.msra.mxu0 0.0
  %161 = vmatprep.subr.mxu0 0.0
  %162 = vmatpush1.msra.mxu0 0.0
  %163 = vmatprep.mubr.f32.mxu0 0.0
  %164 = vmatmul.mubr.f32.gmra.mrb[0].mxu0 %v91
  %v165 = vpop.f32.mrb[0].mxu0
  %v166 = vadd.f32 %v77, %v165
  %v167 = vpop.f32.mrb[0].mxu0
  %168 = vmatprep.mubr.f32.mxu0 0.0
  %169 = vmatmul.mubr.f32.gmra.mrb[0].mxu0 %v94
  %v170 = vpop.f32.mrb[0].mxu0
  %v171 = vadd.f32 %v82, %v170
  %v172 = vpop.f32.mrb[0].mxu0
  %173 = vmatprep.mubr.f32.mxu0 0.0
  %174 = vmatmul.mubr.f32.gmra.mrb[0].mxu0 %v97
  %v175 = vpop.f32.mrb[0].mxu0
  %v176 = vadd.f32 %v87, %v175
  %v177 = vpop.f32.mrb[0].mxu0
  %178 = vdwg.mxu0
  %vm179 = vcmp.gt.f32.partialorder %v171, 0.0
  %vm180 = vcmp.gt.f32.partialorder %v176, 0.0
  %v181 = vmin.f32 %v171, 0.0
  %v182 = vmin.f32 %v176, 0.0
  %v183 = vmul.f32 %v181, 1.442695
  %v184 = vpow.pop %v183
  %v185 = vmul.f32 %v182, 1.442695
  %v186 = vpow.pop %v185
  %v187 = vsub.f32 %v184, 1.0
  %v188 = vsub.f32 %v186, 1.0
  %v189 = vsel %vm179, %v171, %v187
  %v190 = vsel %vm180, %v176, %v188
  %v191 = vld [vmem:[%s3] sm:$0xff]
  %v192 = vld [vmem:[%s4] sm:$0xff]
  %194 = vset.pattern.permute.xlu0 0
  %195 = vperm.xlu0 %194, %v192
  %v196 = vpop.permute.xlu0 %195
  %vm198 = vcmask 130048
  %v200 = vsel %vm198, %v191, 0
  %202 = vmatprep.subr.mxu0 0.0
  %203 = vmatpush1.msra.mxu0 %v189
  %204 = vmatprep.subr.mxu0 0.0
  %205 = vmatpush1.msra.mxu0 %v190
  %206 = vmatprep.subr.mxu0 0.0
  %207 = vmatpush1.msra.mxu0 0.0
  %208 = vmatprep.subr.mxu0 0.0
  %209 = vmatpush1.msra.mxu0 0.0
  %210 = vmatprep.subr.mxu0 0.0
  %211 = vmatpush1.msra.mxu0 0.0
  %212 = vmatprep.subr.mxu0 0.0
  %213 = vmatpush1.msra.mxu0 0.0
  %214 = vmatprep.subr.mxu0 0.0
  %215 = vmatpush1.msra.mxu0 0.0
  %216 = vmatprep.subr.mxu0 0.0
  %217 = vmatpush1.msra.mxu0 0.0
  %218 = vmatprep.subr.mxu0 0.0
  %219 = vmatpush1.msra.mxu0 0.0
  %220 = vmatprep.subr.mxu0 0.0
  %221 = vmatpush1.msra.mxu0 0.0
  %222 = vmatprep.subr.mxu0 0.0
  %223 = vmatpush1.msra.mxu0 0.0
  %224 = vmatprep.subr.mxu0 0.0
  %225 = vmatpush1.msra.mxu0 0.0
  %226 = vmatprep.subr.mxu0 0.0
  %227 = vmatpush1.msra.mxu0 0.0
  %228 = vmatprep.subr.mxu0 0.0
  %229 = vmatpush1.msra.mxu0 0.0
  %230 = vmatprep.subr.mxu0 0.0
  %231 = vmatpush1.msra.mxu0 0.0
  %232 = vmatprep.subr.mxu0 0.0
  %233 = vmatpush1.msra.mxu0 0.0
  %234 = vmatprep.subr.mxu0 0.0
  %235 = vmatpush1.msra.mxu0 0.0
  %236 = vmatprep.subr.mxu0 0.0
  %237 = vmatpush1.msra.mxu0 0.0
  %238 = vmatprep.subr.mxu0 0.0
  %239 = vmatpush1.msra.mxu0 0.0
  %240 = vmatprep.subr.mxu0 0.0
  %241 = vmatpush1.msra.mxu0 0.0
  %242 = vmatprep.subr.mxu0 0.0
  %243 = vmatpush1.msra.mxu0 0.0
  %244 = vmatprep.subr.mxu0 0.0
  %245 = vmatpush1.msra.mxu0 0.0
  %246 = vmatprep.subr.mxu0 0.0
  %247 = vmatpush1.msra.mxu0 0.0
  %248 = vmatprep.subr.mxu0 0.0
  %249 = vmatpush1.msra.mxu0 0.0
  %250 = vmatprep.subr.mxu0 0.0
  %251 = vmatpush1.msra.mxu0 0.0
  %252 = vmatprep.subr.mxu0 0.0
  %253 = vmatpush1.msra.mxu0 0.0
  %254 = vmatprep.subr.mxu0 0.0
  %255 = vmatpush1.msra.mxu0 0.0
  %256 = vmatprep.subr.mxu0 0.0
  %257 = vmatpush1.msra.mxu0 0.0
  %258 = vmatprep.subr.mxu0 0.0
  %259 = vmatpush1.msra.mxu0 0.0
  %260 = vmatprep.subr.mxu0 0.0
  %261 = vmatpush1.msra.mxu0 0.0
  %262 = vmatprep.subr.mxu0 0.0
  %263 = vmatpush1.msra.mxu0 0.0
  %264 = vmatprep.subr.mxu0 0.0
  %265 = vmatpush1.msra.mxu0 0.0
  %266 = vmatprep.mubr.f32.mxu0 0.0
  %267 = vmatmul.mubr.f32.gmra.mrb[0].mxu0 %v200
  %v268 = vpop.f32.mrb[0].mxu0
  %v269 = vadd.f32 %v196, %v268
  %v270 = vpop.f32.mrb[0].mxu0
  %271 = vdwg.mxu0
  %v272 = vadd.f32 %v166, %v269
  %v273 = vadd.f32 %v269, 0.0
  %274 = vrot.lane.b32.xlu0 %v272, 4
  %v275 = vpop.permute.xlu0 %274
  %v276 = vsel %vm59, %v275, 0.0
  %277 = vrot.lane.b32.xlu0 %v272, 2
  %v278 = vpop.permute.xlu0 %277
  %v279 = vsel %vm31, %v278, 0.0
  %280 = vrot.lane.b32.xlu0 %v272, 126
  %v281 = vpop.permute.xlu0 %280
  %v282 = vsel %vm52, %v281, 0.0
  %283 = vrot.lane.b32.xlu0 %v272, 124
  %v284 = vpop.permute.xlu0 %283
  %v285 = vsel %vm66, %v284, 0.0
  %286 = vrot.lane.b32.xlu0 %v272, 8
  %v287 = vpop.permute.xlu0 %286
  %v288 = vadd.s32 %v24, 4294967288
  %vm289 = vcmp.ge.s32.totalorder %v288, 0
  %vm290 = vcmp.lt.s32.totalorder %v288, 64
  %vm291 = vmand %vm289, %vm290
  %v292 = vsel %vm291, %v287, 0.0
  %293 = vrot.lane.b32.xlu0 %v272, 120
  %v294 = vpop.permute.xlu0 %293
  %v295 = vadd.s32 %v24, 8
  %vm296 = vcmp.ge.s32.totalorder %v295, 0
  %vm297 = vcmp.lt.s32.totalorder %v295, 64
  %vm298 = vmand %vm296, %vm297
  %v299 = vsel %vm298, %v294, 0.0
  %s300 = scalar_lea.vmem %s1, 24
  %v301 = vld [vmem:[%s300] sm:$0xff]
  %v302 = vld [vmem:[%s300 + $0x8] sm:$0xff]
  %v303 = vld [vmem:[%s300 + $0x10] sm:$0xff]
  %s304 = scalar_lea.vmem %s2, 24
  %v305 = vld [vmem:[%s304] sm:$0xff]
  %v306 = vld [vmem:[%s304 + $0x8] sm:$0xff]
  %v307 = vld [vmem:[%s304 + $0x10] sm:$0xff]
  %309 = vset.pattern.permute.xlu0 0
  %310 = vperm.xlu0 %309, %v305
  %v311 = vpop.permute.xlu0 %310
  %314 = vset.pattern.permute.xlu0 0
  %315 = vperm.xlu0 %314, %v306
  %v316 = vpop.permute.xlu0 %315
  %319 = vset.pattern.permute.xlu0 0
  %320 = vperm.xlu0 %319, %v307
  %v321 = vpop.permute.xlu0 %320
  %v324 = vsel %vm89, %v301, 0
  %v327 = vsel %vm89, %v302, 0
  %v330 = vsel %vm89, %v303, 0
  %332 = vmatprep.subr.mxu0 0.0
  %333 = vmatpush1.msra.mxu0 %v272
  %334 = vmatprep.subr.mxu0 0.0
  %335 = vmatpush1.msra.mxu0 %v276
  %336 = vmatprep.subr.mxu0 0.0
  %337 = vmatpush1.msra.mxu0 %v279
  %338 = vmatprep.subr.mxu0 0.0
  %339 = vmatpush1.msra.mxu0 %v272
  %340 = vmatprep.subr.mxu0 0.0
  %341 = vmatpush1.msra.mxu0 %v282
  %342 = vmatprep.subr.mxu0 0.0
  %343 = vmatpush1.msra.mxu0 %v285
  %344 = vmatprep.subr.mxu0 0.0
  %345 = vmatpush1.msra.mxu0 %v292
  %346 = vmatprep.subr.mxu0 0.0
  %347 = vmatpush1.msra.mxu0 %v276
  %348 = vmatprep.subr.mxu0 0.0
  %349 = vmatpush1.msra.mxu0 %v272
  %350 = vmatprep.subr.mxu0 0.0
  %351 = vmatpush1.msra.mxu0 %v285
  %352 = vmatprep.subr.mxu0 0.0
  %353 = vmatpush1.msra.mxu0 %v299
  %354 = vmatprep.subr.mxu0 0.0
  %355 = vmatpush1.msra.mxu0 0.0
  %356 = vmatprep.subr.mxu0 0.0
  %357 = vmatpush1.msra.mxu0 0.0
  %358 = vmatprep.subr.mxu0 0.0
  %359 = vmatpush1.msra.mxu0 0.0
  %360 = vmatprep.subr.mxu0 0.0
  %361 = vmatpush1.msra.mxu0 0.0
  %362 = vmatprep.subr.mxu0 0.0
  %363 = vmatpush1.msra.mxu0 0.0
  %364 = vmatprep.subr.mxu0 0.0
  %365 = vmatpush1.msra.mxu0 0.0
  %366 = vmatprep.subr.mxu0 0.0
  %367 = vmatpush1.msra.mxu0 0.0
  %368 = vmatprep.subr.mxu0 0.0
  %369 = vmatpush1.msra.mxu0 0.0
  %370 = vmatprep.subr.mxu0 0.0
  %371 = vmatpush1.msra.mxu0 0.0
  %372 = vmatprep.subr.mxu0 0.0
  %373 = vmatpush1.msra.mxu0 0.0
  %374 = vmatprep.subr.mxu0 0.0
  %375 = vmatpush1.msra.mxu0 0.0
  %376 = vmatprep.subr.mxu0 0.0
  %377 = vmatpush1.msra.mxu0 0.0
  %378 = vmatprep.subr.mxu0 0.0
  %379 = vmatpush1.msra.mxu0 0.0
  %380 = vmatprep.subr.mxu0 0.0
  %381 = vmatpush1.msra.mxu0 0.0
  %382 = vmatprep.subr.mxu0 0.0
  %383 = vmatpush1.msra.mxu0 0.0
  %384 = vmatprep.subr.mxu0 0.0
  %385 = vmatpush1.msra.mxu0 0.0
  %386 = vmatprep.subr.mxu0 0.0
  %387 = vmatpush1.msra.mxu0 0.0
  %388 = vmatprep.subr.mxu0 0.0
  %389 = vmatpush1.msra.mxu0 0.0
  %390 = vmatprep.subr.mxu0 0.0
  %391 = vmatpush1.msra.mxu0 0.0
  %392 = vmatprep.subr.mxu0 0.0
  %393 = vmatpush1.msra.mxu0 0.0
  %394 = vmatprep.subr.mxu0 0.0
  %395 = vmatpush1.msra.mxu0 0.0
  %396 = vmatprep.mubr.f32.mxu0 0.0
  %397 = vmatmul.mubr.f32.gmra.mrb[0].mxu0 %v324
  %v398 = vpop.f32.mrb[0].mxu0
  %v399 = vadd.f32 %v311, %v398
  %v400 = vpop.f32.mrb[0].mxu0
  %401 = vmatprep.mubr.f32.mxu0 0.0
  %402 = vmatmul.mubr.f32.gmra.mrb[0].mxu0 %v327
  %v403 = vpop.f32.mrb[0].mxu0
  %v404 = vadd.f32 %v316, %v403
  %v405 = vpop.f32.mrb[0].mxu0
  %406 = vmatprep.mubr.f32.mxu0 0.0
  %407 = vmatmul.mubr.f32.gmra.mrb[0].mxu0 %v330
  %v408 = vpop.f32.mrb[0].mxu0
  %v409 = vadd.f32 %v321, %v408
  %v410 = vpop.f32.mrb[0].mxu0
  %411 = vdwg.mxu0
  %vm412 = vcmp.gt.f32.partialorder %v404, 0.0
  %vm413 = vcmp.gt.f32.partialorder %v409, 0.0
  %v414 = vmin.f32 %v404, 0.0
  %v415 = vmin.f32 %v409, 0.0
  %v416 = vmul.f32 %v414, 1.442695
  %v417 = vpow.pop %v416
  %v418 = vmul.f32 %v415, 1.442695
  %v419 = vpow.pop %v418
  %v420 = vsub.f32 %v417, 1.0
  %v421 = vsub.f32 %v419, 1.0
  %v422 = vsel %vm412, %v404, %v420
  %v423 = vsel %vm413, %v409, %v421
  %s424 = scalar_lea.vmem %s3, 8
  %v425 = vld [vmem:[%s424] sm:$0xff]
  %s426 = scalar_lea.vmem %s4, 8
  %v427 = vld [vmem:[%s426] sm:$0xff]
  %429 = vset.pattern.permute.xlu0 0
  %430 = vperm.xlu0 %429, %v427
  %v431 = vpop.permute.xlu0 %430
  %v434 = vsel %vm198, %v425, 0
  %436 = vmatprep.subr.mxu0 0.0
  %437 = vmatpush1.msra.mxu0 %v422
  %438 = vmatprep.subr.mxu0 0.0
  %439 = vmatpush1.msra.mxu0 %v423
  %440 = vmatprep.subr.mxu0 0.0
  %441 = vmatpush1.msra.mxu0 0.0
  %442 = vmatprep.subr.mxu0 0.0
  %443 = vmatpush1.msra.mxu0 0.0
  %444 = vmatprep.subr.mxu0 0.0
  %445 = vmatpush1.msra.mxu0 0.0
  %446 = vmatprep.subr.mxu0 0.0
  %447 = vmatpush1.msra.mxu0 0.0
  %448 = vmatprep.subr.mxu0 0.0
  %449 = vmatpush1.msra.mxu0 0.0
  %450 = vmatprep.subr.mxu0 0.0
  %451 = vmatpush1.msra.mxu0 0.0
  %452 = vmatprep.subr.mxu0 0.0
  %453 = vmatpush1.msra.mxu0 0.0
  %454 = vmatprep.subr.mxu0 0.0
  %455 = vmatpush1.msra.mxu0 0.0
  %456 = vmatprep.subr.mxu0 0.0
  %457 = vmatpush1.msra.mxu0 0.0
  %458 = vmatprep.subr.mxu0 0.0
  %459 = vmatpush1.msra.mxu0 0.0
  %460 = vmatprep.subr.mxu0 0.0
  %461 = vmatpush1.msra.mxu0 0.0
  %462 = vmatprep.subr.mxu0 0.0
  %463 = vmatpush1.msra.mxu0 0.0
  %464 = vmatprep.subr.mxu0 0.0
  %465 = vmatpush1.msra.mxu0 0.0
  %466 = vmatprep.subr.mxu0 0.0
  %467 = vmatpush1.msra.mxu0 0.0
  %468 = vmatprep.subr.mxu0 0.0
  %469 = vmatpush1.msra.mxu0 0.0
  %470 = vmatprep.subr.mxu0 0.0
  %471 = vmatpush1.msra.mxu0 0.0
  %472 = vmatprep.subr.mxu0 0.0
  %473 = vmatpush1.msra.mxu0 0.0
  %474 = vmatprep.subr.mxu0 0.0
  %475 = vmatpush1.msra.mxu0 0.0
  %476 = vmatprep.subr.mxu0 0.0
  %477 = vmatpush1.msra.mxu0 0.0
  %478 = vmatprep.subr.mxu0 0.0
  %479 = vmatpush1.msra.mxu0 0.0
  %480 = vmatprep.subr.mxu0 0.0
  %481 = vmatpush1.msra.mxu0 0.0
  %482 = vmatprep.subr.mxu0 0.0
  %483 = vmatpush1.msra.mxu0 0.0
  %484 = vmatprep.subr.mxu0 0.0
  %485 = vmatpush1.msra.mxu0 0.0
  %486 = vmatprep.subr.mxu0 0.0
  %487 = vmatpush1.msra.mxu0 0.0
  %488 = vmatprep.subr.mxu0 0.0
  %489 = vmatpush1.msra.mxu0 0.0
  %490 = vmatprep.subr.mxu0 0.0
  %491 = vmatpush1.msra.mxu0 0.0
  %492 = vmatprep.subr.mxu0 0.0
  %493 = vmatpush1.msra.mxu0 0.0
  %494 = vmatprep.subr.mxu0 0.0
  %495 = vmatpush1.msra.mxu0 0.0
  %496 = vmatprep.subr.mxu0 0.0
  %497 = vmatpush1.msra.mxu0 0.0
  %498 = vmatprep.subr.mxu0 0.0
  %499 = vmatpush1.msra.mxu0 0.0
  %500 = vmatprep.mubr.f32.mxu0 0.0
  %501 = vmatmul.mubr.f32.gmra.mrb[0].mxu0 %v434
  %v502 = vpop.f32.mrb[0].mxu0
  %v503 = vadd.f32 %v431, %v502
  %v504 = vpop.f32.mrb[0].mxu0
  %505 = vdwg.mxu0
  %v506 = vadd.f32 %v399, %v503
  %v507 = vadd.f32 %v273, %v503
  %508 = vrot.lane.b32.xlu0 %v506, 8
  %v509 = vpop.permute.xlu0 %508
  %v510 = vsel %vm291, %v509, 0.0
  %511 = vrot.lane.b32.xlu0 %v506, 4
  %v512 = vpop.permute.xlu0 %511
  %v513 = vsel %vm59, %v512, 0.0
  %514 = vrot.lane.b32.xlu0 %v506, 124
  %v515 = vpop.permute.xlu0 %514
  %v516 = vsel %vm66, %v515, 0.0
  %517 = vrot.lane.b32.xlu0 %v506, 120
  %v518 = vpop.permute.xlu0 %517
  %v519 = vsel %vm298, %v518, 0.0
  %520 = vrot.lane.b32.xlu0 %v506, 16
  %v521 = vpop.permute.xlu0 %520
  %v522 = vadd.s32 %v24, 4294967280
  %vm523 = vcmp.ge.s32.totalorder %v522, 0
  %vm524 = vcmp.lt.s32.totalorder %v522, 64
  %vm525 = vmand %vm523, %vm524
  %v526 = vsel %vm525, %v521, 0.0
  %527 = vrot.lane.b32.xlu0 %v506, 112
  %v528 = vpop.permute.xlu0 %527
  %v529 = vadd.s32 %v24, 16
  %vm530 = vcmp.ge.s32.totalorder %v529, 0
  %vm531 = vcmp.lt.s32.totalorder %v529, 64
  %vm532 = vmand %vm530, %vm531
  %v533 = vsel %vm532, %v528, 0.0
  %s534 = scalar_lea.vmem %s1, 48
  %v535 = vld [vmem:[%s534] sm:$0xff]
  %v536 = vld [vmem:[%s534 + $0x8] sm:$0xff]
  %v537 = vld [vmem:[%s534 + $0x10] sm:$0xff]
  %s538 = scalar_lea.vmem %s2, 48
  %v539 = vld [vmem:[%s538] sm:$0xff]
  %v540 = vld [vmem:[%s538 + $0x8] sm:$0xff]
  %v541 = vld [vmem:[%s538 + $0x10] sm:$0xff]
  %543 = vset.pattern.permute.xlu0 0
  %544 = vperm.xlu0 %543, %v539
  %v545 = vpop.permute.xlu0 %544
  %548 = vset.pattern.permute.xlu0 0
  %549 = vperm.xlu0 %548, %v540
  %v550 = vpop.permute.xlu0 %549
  %553 = vset.pattern.permute.xlu0 0
  %554 = vperm.xlu0 %553, %v541
  %v555 = vpop.permute.xlu0 %554
  %v558 = vsel %vm89, %v535, 0
  %v561 = vsel %vm89, %v536, 0
  %v564 = vsel %vm89, %v537, 0
  %566 = vmatprep.subr.mxu0 0.0
  %567 = vmatpush1.msra.mxu0 %v506
  %568 = vmatprep.subr.mxu0 0.0
  %569 = vmatpush1.msra.mxu0 %v510
  %570 = vmatprep.subr.mxu0 0.0
  %571 = vmatpush1.msra.mxu0 %v513
  %572 = vmatprep.subr.mxu0 0.0
  %573 = vmatpush1.msra.mxu0 %v506
  %574 = vmatprep.subr.mxu0 0.0
  %575 = vmatpush1.msra.mxu0 %v516
  %576 = vmatprep.subr.mxu0 0.0
  %577 = vmatpush1.msra.mxu0 %v519
  %578 = vmatprep.subr.mxu0 0.0
  %579 = vmatpush1.msra.mxu0 %v526
  %580 = vmatprep.subr.mxu0 0.0
  %581 = vmatpush1.msra.mxu0 %v510
  %582 = vmatprep.subr.mxu0 0.0
  %583 = vmatpush1.msra.mxu0 %v506
  %584 = vmatprep.subr.mxu0 0.0
  %585 = vmatpush1.msra.mxu0 %v519
  %586 = vmatprep.subr.mxu0 0.0
  %587 = vmatpush1.msra.mxu0 %v533
  %588 = vmatprep.subr.mxu0 0.0
  %589 = vmatpush1.msra.mxu0 0.0
  %590 = vmatprep.subr.mxu0 0.0
  %591 = vmatpush1.msra.mxu0 0.0
  %592 = vmatprep.subr.mxu0 0.0
  %593 = vmatpush1.msra.mxu0 0.0
  %594 = vmatprep.subr.mxu0 0.0
  %595 = vmatpush1.msra.mxu0 0.0
  %596 = vmatprep.subr.mxu0 0.0
  %597 = vmatpush1.msra.mxu0 0.0
  %598 = vmatprep.subr.mxu0 0.0
  %599 = vmatpush1.msra.mxu0 0.0
  %600 = vmatprep.subr.mxu0 0.0
  %601 = vmatpush1.msra.mxu0 0.0
  %602 = vmatprep.subr.mxu0 0.0
  %603 = vmatpush1.msra.mxu0 0.0
  %604 = vmatprep.subr.mxu0 0.0
  %605 = vmatpush1.msra.mxu0 0.0
  %606 = vmatprep.subr.mxu0 0.0
  %607 = vmatpush1.msra.mxu0 0.0
  %608 = vmatprep.subr.mxu0 0.0
  %609 = vmatpush1.msra.mxu0 0.0
  %610 = vmatprep.subr.mxu0 0.0
  %611 = vmatpush1.msra.mxu0 0.0
  %612 = vmatprep.subr.mxu0 0.0
  %613 = vmatpush1.msra.mxu0 0.0
  %614 = vmatprep.subr.mxu0 0.0
  %615 = vmatpush1.msra.mxu0 0.0
  %616 = vmatprep.subr.mxu0 0.0
  %617 = vmatpush1.msra.mxu0 0.0
  %618 = vmatprep.subr.mxu0 0.0
  %619 = vmatpush1.msra.mxu0 0.0
  %620 = vmatprep.subr.mxu0 0.0
  %621 = vmatpush1.msra.mxu0 0.0
  %622 = vmatprep.subr.mxu0 0.0
  %623 = vmatpush1.msra.mxu0 0.0
  %624 = vmatprep.subr.mxu0 0.0
  %625 = vmatpush1.msra.mxu0 0.0
  %626 = vmatprep.subr.mxu0 0.0
  %627 = vmatpush1.msra.mxu0 0.0
  %628 = vmatprep.subr.mxu0 0.0
  %629 = vmatpush1.msra.mxu0 0.0
  %630 = vmatprep.mubr.f32.mxu0 0.0
  %631 = vmatmul.mubr.f32.gmra.mrb[0].mxu0 %v558
  %v632 = vpop.f32.mrb[0].mxu0
  %v633 = vadd.f32 %v545, %v632
  %v634 = vpop.f32.mrb[0].mxu0
  %635 = vmatprep.mubr.f32.mxu0 0.0
  %636 = vmatmul.mubr.f32.gmra.mrb[0].mxu0 %v561
  %v637 = vpop.f32.mrb[0].mxu0
  %v638 = vadd.f32 %v550, %v637
  %v639 = vpop.f32.mrb[0].mxu0
  %640 = vmatprep.mubr.f32.mxu0 0.0
  %641 = vmatmul.mubr.f32.gmra.mrb[0].mxu0 %v564
  %v642 = vpop.f32.mrb[0].mxu0
  %v643 = vadd.f32 %v555, %v642
  %v644 = vpop.f32.mrb[0].mxu0
  %645 = vdwg.mxu0
  %vm646 = vcmp.gt.f32.partialorder %v638, 0.0
  %vm647 = vcmp.gt.f32.partialorder %v643, 0.0
  %v648 = vmin.f32 %v638, 0.0
  %v649 = vmin.f32 %v643, 0.0
  %v650 = vmul.f32 %v648, 1.442695
  %v651 = vpow.pop %v650
  %v652 = vmul.f32 %v649, 1.442695
  %v653 = vpow.pop %v652
  %v654 = vsub.f32 %v651, 1.0
  %v655 = vsub.f32 %v653, 1.0
  %v656 = vsel %vm646, %v638, %v654
  %v657 = vsel %vm647, %v643, %v655
  %s658 = scalar_lea.vmem %s3, 16
  %v659 = vld [vmem:[%s658] sm:$0xff]
  %s660 = scalar_lea.vmem %s4, 16
  %v661 = vld [vmem:[%s660] sm:$0xff]
  %663 = vset.pattern.permute.xlu0 0
  %664 = vperm.xlu0 %663, %v661
  %v665 = vpop.permute.xlu0 %664
  %v668 = vsel %vm198, %v659, 0
  %670 = vmatprep.subr.mxu0 0.0
  %671 = vmatpush1.msra.mxu0 %v656
  %672 = vmatprep.subr.mxu0 0.0
  %673 = vmatpush1.msra.mxu0 %v657
  %674 = vmatprep.subr.mxu0 0.0
  %675 = vmatpush1.msra.mxu0 0.0
  %676 = vmatprep.subr.mxu0 0.0
  %677 = vmatpush1.msra.mxu0 0.0
  %678 = vmatprep.subr.mxu0 0.0
  %679 = vmatpush1.msra.mxu0 0.0
  %680 = vmatprep.subr.mxu0 0.0
  %681 = vmatpush1.msra.mxu0 0.0
  %682 = vmatprep.subr.mxu0 0.0
  %683 = vmatpush1.msra.mxu0 0.0
  %684 = vmatprep.subr.mxu0 0.0
  %685 = vmatpush1.msra.mxu0 0.0
  %686 = vmatprep.subr.mxu0 0.0
  %687 = vmatpush1.msra.mxu0 0.0
  %688 = vmatprep.subr.mxu0 0.0
  %689 = vmatpush1.msra.mxu0 0.0
  %690 = vmatprep.subr.mxu0 0.0
  %691 = vmatpush1.msra.mxu0 0.0
  %692 = vmatprep.subr.mxu0 0.0
  %693 = vmatpush1.msra.mxu0 0.0
  %694 = vmatprep.subr.mxu0 0.0
  %695 = vmatpush1.msra.mxu0 0.0
  %696 = vmatprep.subr.mxu0 0.0
  %697 = vmatpush1.msra.mxu0 0.0
  %698 = vmatprep.subr.mxu0 0.0
  %699 = vmatpush1.msra.mxu0 0.0
  %700 = vmatprep.subr.mxu0 0.0
  %701 = vmatpush1.msra.mxu0 0.0
  %702 = vmatprep.subr.mxu0 0.0
  %703 = vmatpush1.msra.mxu0 0.0
  %704 = vmatprep.subr.mxu0 0.0
  %705 = vmatpush1.msra.mxu0 0.0
  %706 = vmatprep.subr.mxu0 0.0
  %707 = vmatpush1.msra.mxu0 0.0
  %708 = vmatprep.subr.mxu0 0.0
  %709 = vmatpush1.msra.mxu0 0.0
  %710 = vmatprep.subr.mxu0 0.0
  %711 = vmatpush1.msra.mxu0 0.0
  %712 = vmatprep.subr.mxu0 0.0
  %713 = vmatpush1.msra.mxu0 0.0
  %714 = vmatprep.subr.mxu0 0.0
  %715 = vmatpush1.msra.mxu0 0.0
  %716 = vmatprep.subr.mxu0 0.0
  %717 = vmatpush1.msra.mxu0 0.0
  %718 = vmatprep.subr.mxu0 0.0
  %719 = vmatpush1.msra.mxu0 0.0
  %720 = vmatprep.subr.mxu0 0.0
  %721 = vmatpush1.msra.mxu0 0.0
  %722 = vmatprep.subr.mxu0 0.0
  %723 = vmatpush1.msra.mxu0 0.0
  %724 = vmatprep.subr.mxu0 0.0
  %725 = vmatpush1.msra.mxu0 0.0
  %726 = vmatprep.subr.mxu0 0.0
  %727 = vmatpush1.msra.mxu0 0.0
  %728 = vmatprep.subr.mxu0 0.0
  %729 = vmatpush1.msra.mxu0 0.0
  %730 = vmatprep.subr.mxu0 0.0
  %731 = vmatpush1.msra.mxu0 0.0
  %732 = vmatprep.subr.mxu0 0.0
  %733 = vmatpush1.msra.mxu0 0.0
  %734 = vmatprep.mubr.f32.mxu0 0.0
  %735 = vmatmul.mubr.f32.gmra.mrb[0].mxu0 %v668
  %v736 = vpop.f32.mrb[0].mxu0
  %v737 = vadd.f32 %v665, %v736
  %v738 = vpop.f32.mrb[0].mxu0
  %739 = vdwg.mxu0
  %v740 = vadd.f32 %v633, %v737
  %v741 = vadd.f32 %v507, %v737
  %vm742 = vcmp.gt.f32.partialorder %v740, 0.0
  %v743 = vmin.f32 %v740, 0.0
  %v744 = vmul.f32 %v743, 1.442695
  %v745 = vpow.pop %v744
  %v746 = vsub.f32 %v745, 1.0
  %v747 = vsel %vm742, %v740, %v746
  %748 = vst [vmem:[%s5] sm:$0xff] %v747
  %749 = vst [vmem:[%s6] sm:$0xff] %v741
  // Predicated region
  $region22: #{tcn_forward_pallas.1} parent=0 // pred_check
    _
  $region23: #{tcn_forward_pallas.1} parent=0 // pred_check_branch
    %751 = sbr.rel (0) target = $region25
  $region24: #{tcn_forward_pallas.1} parent=0 // pred_region
    _
  $region25: #{tcn_forward_pallas.1} parent=0 // pred_fallthru
    _
  // Predicated region
  $region26: #{tcn_forward_pallas.1} parent=0 // pred_check
    _
  $region27: #{tcn_forward_pallas.1} parent=0 // pred_check_branch
    %753 = sbr.rel (0) target = $region29
  $region28: #{tcn_forward_pallas.1} parent=0 // pred_region
    _
  $region29: #{tcn_forward_pallas.1} parent=0 // pred_fallthru
    _
  // Predicated region
  $region30: #{tcn_forward_pallas.1} parent=0 // pred_check
    _
  $region31: #{tcn_forward_pallas.1} parent=0 // pred_check_branch
    %755 = sbr.rel (0) target = $region33
  $region32: #{tcn_forward_pallas.1} parent=0 // pred_region
    _
  $region33: #{tcn_forward_pallas.1} parent=0 // pred_fallthru
    _
  // Predicated region
  $region34: #{tcn_forward_pallas.1} parent=0 // pred_check
    _
  $region35: #{tcn_forward_pallas.1} parent=0 // pred_check_branch
    %757 = sbr.rel (0) target = $region37
  $region36: #{tcn_forward_pallas.1} parent=0 // pred_region
    _
  $region37: #{tcn_forward_pallas.1} parent=0 // pred_fallthru
    _

</llo_original>
